<compile_context>
chip_gen: v7x
topology: tpu7x:2x2x1
jax: 0.10.0
libtpu: 0.0.40
codegen_flags: <defaults>
</compile_context>

<pallas_src>
import math
from functools import partial

import jax
import jax.numpy as jnp
from jax.experimental import pallas as pl
from jax.experimental.pallas import tpu as pltpu

_LANE = 128
_VMEM_LIMIT = 32 * 1024 * 1024


def _round_up(v, m):
    return ((v + m - 1) // m) * m


def _pad2d(a, rows, cols):
    return jnp.pad(a, ((0, rows - a.shape[0]), (0, cols - a.shape[1])))


def _pick_tile(dim, candidates=(512, 256, 128)):
    for c in candidates:
        if dim % c == 0:
            return c
    return dim


# ----------------------- support = X @ W (dense GEMM) -----------------------
def _support_kernel(x_ref, w_ref, o_ref, acc_ref):
    k = pl.program_id(1)

    @pl.when(k == 0)
    def _():
        acc_ref[...] = jnp.zeros_like(acc_ref)

    acc_ref[...] += jnp.dot(x_ref[...], w_ref[...],
                            preferred_element_type=jnp.float32)

    @pl.when(k == pl.num_programs(1) - 1)
    def _():
        o_ref[...] = acc_ref[...].astype(o_ref.dtype)


def _support_matmul(x, w, *, tile_m, out_dtype):
    m, kdim = x.shape
    nout = w.shape[1]
    tk = _pick_tile(kdim)
    grid = (m // tile_m, kdim // tk)
    in_bytes = jnp.dtype(x.dtype).itemsize
    cost = pl.CostEstimate(
        flops=2 * m * kdim * nout,
        transcendentals=0,
        bytes_accessed=(m * kdim + kdim * nout) * in_bytes
        + m * nout * jnp.dtype(out_dtype).itemsize)
    return pl.pallas_call(
        _support_kernel,
        out_shape=jax.ShapeDtypeStruct((m, nout), out_dtype),
        grid=grid,
        in_specs=[
            pl.BlockSpec((tile_m, tk), lambda i, k: (i, k)),    # X tile
            pl.BlockSpec((tk, nout), lambda i, k: (k, 0)),      # W tile
        ],
        out_specs=pl.BlockSpec((tile_m, nout), lambda i, k: (i, 0)),
        scratch_shapes=[pltpu.VMEM((tile_m, nout), jnp.float32)],
        compiler_params=pltpu.CompilerParams(
            dimension_semantics=("parallel", "arbitrary"),
            vmem_limit_bytes=_VMEM_LIMIT),
        cost_estimate=cost,
    )(x, w)


# ------------------ out = [relu](A_hat @ support + bias) --------------------
def _aggregate_kernel(adj_ref, s_ref, b_ref, o_ref, acc_ref, *, apply_relu):
    k = pl.program_id(1)

    @pl.when(k == 0)
    def _():
        acc_ref[...] = jnp.zeros_like(acc_ref)

    acc_ref[...] += jnp.dot(adj_ref[...], s_ref[...],
                            preferred_element_type=jnp.float32)

    @pl.when(k == pl.num_programs(1) - 1)
    def _():
        r = acc_ref[...] + b_ref[...]
        if apply_relu:
            r = jnp.maximum(r, 0.0)
        o_ref[...] = r.astype(o_ref.dtype)


def _aggregate(adj, support, bias, *, apply_relu, tile_m, tile_k, out_dtype):
    n = adj.shape[0]
    nout = support.shape[1]
    grid = (n // tile_m, n // tile_k)
    adj_bytes = jnp.dtype(adj.dtype).itemsize
    cost = pl.CostEstimate(
        flops=2 * n * n * nout,
        transcendentals=0,
        bytes_accessed=n * n * adj_bytes
        + n * nout * jnp.dtype(support.dtype).itemsize
        + n * nout * jnp.dtype(out_dtype).itemsize)
    return pl.pallas_call(
        partial(_aggregate_kernel, apply_relu=apply_relu),
        out_shape=jax.ShapeDtypeStruct((n, nout), out_dtype),
        grid=grid,
        in_specs=[
            pl.BlockSpec((tile_m, tile_k), lambda i, k: (i, k)),  # A_hat tile
            pl.BlockSpec((tile_k, nout), lambda i, k: (k, 0)),    # support
            pl.BlockSpec((1, nout), lambda i, k: (0, 0)),         # bias
        ],
        out_specs=pl.BlockSpec((tile_m, nout), lambda i, k: (i, 0)),
        scratch_shapes=[pltpu.VMEM((tile_m, nout), jnp.float32)],
        compiler_params=pltpu.CompilerParams(
            dimension_semantics=("parallel", "arbitrary"),
            vmem_limit_bytes=_VMEM_LIMIT),
        cost_estimate=cost,
    )(adj, support, bias)


# ------------------------------- full forward -------------------------------
def gcn_forward(x, adj, params, *, tile_m=256, tile_k=256,
                compute_dtype=jnp.float32):
    """GCN forward: relu(A@(X@W0)+b0) -> dropout(identity) -> A@(.@W1)+b1."""
    w0, b0, w1, b1 = params
    n, nfeat = x.shape
    nhid = w0.shape[1]
    nclass = w1.shape[1]

    n_pad = _round_up(n, math.lcm(tile_m, tile_k))
    nfeat_pad = _round_up(nfeat, _LANE)
    nhid_pad = _round_up(nhid, _LANE)
    nclass_pad = _round_up(nclass, _LANE)

    # Zero padding: padded rows/cols of adj/X/W/b never leak into real output
    # rows/cols (padded output rows/cols are sliced off at the end).
    adj_p = _pad2d(adj, n_pad, n_pad).astype(compute_dtype)
    x_p = _pad2d(x, n_pad, nfeat_pad).astype(compute_dtype)
    w0_p = _pad2d(w0, nfeat_pad, nhid_pad).astype(compute_dtype)
    w1_p = _pad2d(w1, nhid_pad, nclass_pad).astype(compute_dtype)
    b0_p = _pad2d(b0.reshape(1, -1), 1, nhid_pad).astype(jnp.float32)
    b1_p = _pad2d(b1.reshape(1, -1), 1, nclass_pad).astype(jnp.float32)

    # Layer 1: h1 = relu(A_hat @ (X @ W0) + b0)
    s0 = _support_matmul(x_p, w0_p, tile_m=tile_m, out_dtype=compute_dtype)
    h1 = _aggregate(adj_p, s0, b0_p, apply_relu=True,
                    tile_m=tile_m, tile_k=tile_k, out_dtype=compute_dtype)

    # TODO(synk): F.dropout with training=False is the identity; a training
    # path would mask h1 here via pltpu.prng_seed / prng_random_bits.

    # Layer 2: out = A_hat @ (h1 @ W1) + b1
    s1 = _support_matmul(h1, w1_p, tile_m=tile_m, out_dtype=compute_dtype)
    out = _aggregate(adj_p, s1, b1_p, apply_relu=False,
                     tile_m=tile_m, tile_k=tile_k, out_dtype=jnp.float32)

    return out[:n, :nclass]


# ------------------------------ demo utilities ------------------------------
def init_gcn_params(key, nfeat, nhid, nclass):
    """uniform(-stdv, stdv) with stdv = 1/sqrt(out_features), matching
    GraphConvolution.reset_parameters."""
    k0, k1, k2, k3 = jax.random.split(key, 4)
    stdv0 = 1.0 / jnp.sqrt(nhid)
    stdv1 = 1.0 / jnp.sqrt(nclass)
    w0 = jax.random.uniform(k0, (nfeat, nhid), jnp.float32, -stdv0, stdv0)
    b0 = jax.random.uniform(k1, (nhid,), jnp.float32, -stdv0, stdv0)
    w1 = jax.random.uniform(k2, (nhid, nclass), jnp.float32, -stdv1, stdv1)
    b1 = jax.random.uniform(k3, (nclass,), jnp.float32, -stdv1, stdv1)
    return w0, b0, w1, b1


def make_normalized_adj(key, n):
    """A_hat = D^-1/2 (A + I) D^-1/2 from a random symmetric 0/1 adjacency."""
    a = (jax.random.uniform(key, (n, n)) > 0.9).astype(jnp.float32)
    a = jnp.maximum(a, a.T)                       # symmetric
    a = a + jnp.eye(n, dtype=jnp.float32)         # self connections
    deg = jnp.sum(a, axis=1)
    d_inv_sqrt = 1.0 / jnp.sqrt(deg)
    return a * d_inv_sqrt[:, None] * d_inv_sqrt[None, :]


if __name__ == "__main__":
    key = jax.random.PRNGKey(0)
    k_x, k_adj, k_p = jax.random.split(key, 3)

    # Small, Cora-like toy shapes (deliberately NOT multiples of the tile so
    # the padding / slicing path is exercised).
    n_nodes, nfeat, nhid, nclass = 200, 48, 32, 7

    x = jax.random.normal(k_x, (n_nodes, nfeat), jnp.float32)
    adj = make_normalized_adj(k_adj, n_nodes)
    params = init_gcn_params(k_p, nfeat, nhid, nclass)

    fwd = jax.jit(partial(gcn_forward, tile_m=256, tile_k=256,
                          compute_dtype=jnp.float32))
    out = fwd(x, adj, params)
    out = jax.block_until_ready(out)

    # Pure-JAX reference of the same math (eval mode: dropout = identity).
    w0, b0, w1, b1 = params
    h1 = jnp.maximum(adj @ (x @ w0) + b0, 0.0)
    ref = adj @ (h1 @ w1) + b1

    assert out.shape == (n_nodes, nclass)
    assert jnp.allclose(out, ref, atol=1e-3, rtol=1e-3), (
        float(jnp.max(jnp.abs(out - ref))))

    print("KERNEL_OK")
</pallas_src>

<mosaic_0001>
module attributes {stable_mosaic.version = 11 : i64} {
  func.func @_support_kernel(%arg0: i32, %arg1: i32, %arg2: memref<256x128xf32, #tpu.memory_space<vmem>>, %arg3: memref<128x128xf32, #tpu.memory_space<vmem>>, %arg4: memref<256x128xf32, #tpu.memory_space<vmem>>, %arg5: memref<256x128xf32, #tpu.memory_space<vmem>>) attributes {dimension_semantics = [#tpu.dimension_semantics<parallel>, #tpu.dimension_semantics<arbitrary>], iteration_bounds = array<i64: 1, 1>, scalar_prefetch = 0 : i64, scratch_operands = 1 : i64, tpu.core_type = #tpu.core_type<tc>, window_params = [{transform_indices = @transform_0, window_bounds = array<i64: 256, 128>}, {transform_indices = @transform_1, window_bounds = array<i64: 128, 128>}, {transform_indices = @transform_2, window_bounds = array<i64: 256, 128>}]} {
    %c0_i32 = arith.constant 0 : i32
    %0 = arith.cmpi eq, %arg1, %c0_i32 : i32
    %1 = arith.extui %0 : i1 to i32
    %c0_i32_0 = arith.constant 0 : i32
    %2 = arith.cmpi ne, %1, %c0_i32_0 : i32
    scf.if %2 {
      %cst_10 = arith.constant 0.000000e+00 : f32
      %12 = vector.broadcast %cst_10 : f32 to vector<256x128xf32>
      %c0_11 = arith.constant 0 : index
      %c0_12 = arith.constant 0 : index
      %13 = vector.load %arg5[%c0_11, %c0_12] : memref<256x128xf32, #tpu.memory_space<vmem>>, vector<256x128xf32>
      tpu.vector_store %arg5[%c0_11, %c0_12], %12 {strides = array<i32>} : memref<256x128xf32, #tpu.memory_space<vmem>>, vector<256x128xf32>,
    } else {
    }
    %c0 = arith.constant 0 : index
    %c0_1 = arith.constant 0 : index
    %3 = vector.load %arg5[%c0, %c0_1] : memref<256x128xf32, #tpu.memory_space<vmem>>, vector<256x128xf32>
    %c0_2 = arith.constant 0 : index
    %c0_3 = arith.constant 0 : index
    %4 = vector.load %arg2[%c0_2, %c0_3] : memref<256x128xf32, #tpu.memory_space<vmem>>, vector<256x128xf32>
    %c0_4 = arith.constant 0 : index
    %c0_5 = arith.constant 0 : index
    %5 = vector.load %arg3[%c0_4, %c0_5] : memref<128x128xf32, #tpu.memory_space<vmem>>, vector<128x128xf32>
    %cst = arith.constant dense<0.000000e+00> : vector<256x128xf32>
    %6 = tpu.matmul %4, %5, %cst {dimension_numbers = #tpu.dot_dimension_numbers<[1], [0], [0], [1], [0, 0, 1, 1], [], []>} : vector<256x128xf32>, vector<128x128xf32>, vector<256x128xf32> -> vector<256x128xf32>
    %7 = arith.addf %3, %6 : vector<256x128xf32>
    %c0_6 = arith.constant 0 : index
    %c0_7 = arith.constant 0 : index
    %8 = vector.load %arg5[%c0_6, %c0_7] : memref<256x128xf32, #tpu.memory_space<vmem>>, vector<256x128xf32>
    tpu.vector_store %arg5[%c0_6, %c0_7], %7 {strides = array<i32>} : memref<256x128xf32, #tpu.memory_space<vmem>>, vector<256x128xf32>,
    %c0_i32_8 = arith.constant 0 : i32
    %9 = arith.cmpi eq, %arg1, %c0_i32_8 : i32
    %10 = arith.extui %9 : i1 to i32
    %c0_i32_9 = arith.constant 0 : i32
    %11 = arith.cmpi ne, %10, %c0_i32_9 : i32
    scf.if %11 {
      %c0_10 = arith.constant 0 : index
      %c0_11 = arith.constant 0 : index
      %12 = vector.load %arg5[%c0_10, %c0_11] : memref<256x128xf32, #tpu.memory_space<vmem>>, vector<256x128xf32>
      %c0_12 = arith.constant 0 : index
      %c0_13 = arith.constant 0 : index
      %13 = vector.load %arg4[%c0_12, %c0_13] : memref<256x128xf32, #tpu.memory_space<vmem>>, vector<256x128xf32>
      tpu.vector_store %arg4[%c0_12, %c0_13], %12 {strides = array<i32>} : memref<256x128xf32, #tpu.memory_space<vmem>>, vector<256x128xf32>,
    } else {
    }
    return
  }
  func.func @transform_0(%arg0: i32, %arg1: i32) -> (i32, i32) {
    %c0_i32 = arith.constant 0 : i32
    return %arg0, %arg1 : i32, i32
  }
  func.func @transform_1(%arg0: i32, %arg1: i32) -> (i32, i32) {
    %c0_i32 = arith.constant 0 : i32
    %c0_i32_0 = arith.constant 0 : i32
    return %arg1, %c0_i32 : i32, i32
  }
  func.func @transform_2(%arg0: i32, %arg1: i32) -> (i32, i32) {
    %c0_i32 = arith.constant 0 : i32
    %c0_i32_0 = arith.constant 0 : i32
    return %arg0, %c0_i32 : i32, i32
  }
}

module attributes {stable_mosaic.version = 11 : i64} {
  func.func @_aggregate_kernel(%arg0: i32, %arg1: i32, %arg2: memref<256x256xf32, #tpu.memory_space<vmem>>, %arg3: memref<256x128xf32, #tpu.memory_space<vmem>>, %arg4: memref<1x128xf32, #tpu.memory_space<vmem>>, %arg5: memref<256x128xf32, #tpu.memory_space<vmem>>, %arg6: memref<256x128xf32, #tpu.memory_space<vmem>>) attributes {dimension_semantics = [#tpu.dimension_semantics<parallel>, #tpu.dimension_semantics<arbitrary>], iteration_bounds = array<i64: 1, 1>, scalar_prefetch = 0 : i64, scratch_operands = 1 : i64, tpu.core_type = #tpu.core_type<tc>, window_params = [{transform_indices = @transform_0, window_bounds = array<i64: 256, 256>}, {transform_indices = @transform_1, window_bounds = array<i64: 256, 128>}, {pipeline_mode = #tpu.pipeline_mode<synchronous>, transform_indices = @transform_2, window_bounds = array<i64: 1, 128>}, {transform_indices = @transform_3, window_bounds = array<i64: 256, 128>}]} {
    %c0_i32 = arith.constant 0 : i32
    %0 = arith.cmpi eq, %arg1, %c0_i32 : i32
    %1 = arith.extui %0 : i1 to i32
    %c0_i32_0 = arith.constant 0 : i32
    %2 = arith.cmpi ne, %1, %c0_i32_0 : i32
    scf.if %2 {
      %cst_10 = arith.constant 0.000000e+00 : f32
      %12 = vector.broadcast %cst_10 : f32 to vector<256x128xf32>
      %c0_11 = arith.constant 0 : index
      %c0_12 = arith.constant 0 : index
      %13 = vector.load %arg6[%c0_11, %c0_12] : memref<256x128xf32, #tpu.memory_space<vmem>>, vector<256x128xf32>
      tpu.vector_store %arg6[%c0_11, %c0_12], %12 {strides = array<i32>} : memref<256x128xf32, #tpu.memory_space<vmem>>, vector<256x128xf32>,
    } else {
    }
    %c0 = arith.constant 0 : index
    %c0_1 = arith.constant 0 : index
    %3 = vector.load %arg6[%c0, %c0_1] : memref<256x128xf32, #tpu.memory_space<vmem>>, vector<256x128xf32>
    %c0_2 = arith.constant 0 : index
    %c0_3 = arith.constant 0 : index
    %4 = vector.load %arg2[%c0_2, %c0_3] : memref<256x256xf32, #tpu.memory_space<vmem>>, vector<256x256xf32>
    %c0_4 = arith.constant 0 : index
    %c0_5 = arith.constant 0 : index
    %5 = vector.load %arg3[%c0_4, %c0_5] : memref<256x128xf32, #tpu.memory_space<vmem>>, vector<256x128xf32>
    %cst = arith.constant dense<0.000000e+00> : vector<256x128xf32>
    %6 = tpu.matmul %4, %5, %cst {dimension_numbers = #tpu.dot_dimension_numbers<[1], [0], [0], [1], [0, 0, 1, 1], [], []>} : vector<256x256xf32>, vector<256x128xf32>, vector<256x128xf32> -> vector<256x128xf32>
    %7 = arith.addf %3, %6 : vector<256x128xf32>
    %c0_6 = arith.constant 0 : index
    %c0_7 = arith.constant 0 : index
    %8 = vector.load %arg6[%c0_6, %c0_7] : memref<256x128xf32, #tpu.memory_space<vmem>>, vector<256x128xf32>
    tpu.vector_store %arg6[%c0_6, %c0_7], %7 {strides = array<i32>} : memref<256x128xf32, #tpu.memory_space<vmem>>, vector<256x128xf32>,
    %c0_i32_8 = arith.constant 0 : i32
    %9 = arith.cmpi eq, %arg1, %c0_i32_8 : i32
    %10 = arith.extui %9 : i1 to i32
    %c0_i32_9 = arith.constant 0 : i32
    %11 = arith.cmpi ne, %10, %c0_i32_9 : i32
    scf.if %11 {
      %c0_10 = arith.constant 0 : index
      %c0_11 = arith.constant 0 : index
      %12 = vector.load %arg6[%c0_10, %c0_11] : memref<256x128xf32, #tpu.memory_space<vmem>>, vector<256x128xf32>
      %c0_12 = arith.constant 0 : index
      %c0_13 = arith.constant 0 : index
      %13 = vector.load %arg4[%c0_12, %c0_13] : memref<1x128xf32, #tpu.memory_space<vmem>>, vector<1x128xf32>
      %14 = vector.broadcast %13 : vector<1x128xf32> to vector<256x128xf32>
      %15 = arith.addf %12, %14 : vector<256x128xf32>
      %cst_14 = arith.constant 0.000000e+00 : f32
      %16 = vector.broadcast %cst_14 : f32 to vector<256x128xf32>
      %17 = arith.maximumf %15, %16 : vector<256x128xf32>
      %c0_15 = arith.constant 0 : index
      %c0_16 = arith.constant 0 : index
      %18 = vector.load %arg5[%c0_15, %c0_16] : memref<256x128xf32, #tpu.memory_space<vmem>>, vector<256x128xf32>
      tpu.vector_store %arg5[%c0_15, %c0_16], %17 {strides = array<i32>} : memref<256x128xf32, #tpu.memory_space<vmem>>, vector<256x128xf32>,
    } else {
    }
    return
  }
  func.func @transform_0(%arg0: i32, %arg1: i32) -> (i32, i32) {
    %c0_i32 = arith.constant 0 : i32
    return %arg0, %arg1 : i32, i32
  }
  func.func @transform_1(%arg0: i32, %arg1: i32) -> (i32, i32) {
    %c0_i32 = arith.constant 0 : i32
    %c0_i32_0 = arith.constant 0 : i32
    return %arg1, %c0_i32 : i32, i32
  }
  func.func @transform_2(%arg0: i32, %arg1: i32) -> (i32, i32) {
    %c0_i32 = arith.constant 0 : i32
    %c0_i32_0 = arith.constant 0 : i32
    %c0_i32_1 = arith.constant 0 : i32
    return %c0_i32, %c0_i32_0 : i32, i32
  }
  func.func @transform_3(%arg0: i32, %arg1: i32) -> (i32, i32) {
    %c0_i32 = arith.constant 0 : i32
    %c0_i32_0 = arith.constant 0 : i32
    return %arg0, %c0_i32 : i32, i32
  }
}

module attributes {stable_mosaic.version = 11 : i64} {
  func.func @_aggregate_kernel(%arg0: i32, %arg1: i32, %arg2: memref<256x256xf32, #tpu.memory_space<vmem>>, %arg3: memref<256x128xf32, #tpu.memory_space<vmem>>, %arg4: memref<1x128xf32, #tpu.memory_space<vmem>>, %arg5: memref<256x128xf32, #tpu.memory_space<vmem>>, %arg6: memref<256x128xf32, #tpu.memory_space<vmem>>) attributes {dimension_semantics = [#tpu.dimension_semantics<parallel>, #tpu.dimension_semantics<arbitrary>], iteration_bounds = array<i64: 1, 1>, scalar_prefetch = 0 : i64, scratch_operands = 1 : i64, tpu.core_type = #tpu.core_type<tc>, window_params = [{transform_indices = @transform_0, window_bounds = array<i64: 256, 256>}, {transform_indices = @transform_1, window_bounds = array<i64: 256, 128>}, {pipeline_mode = #tpu.pipeline_mode<synchronous>, transform_indices = @transform_2, window_bounds = array<i64: 1, 128>}, {transform_indices = @transform_3, window_bounds = array<i64: 256, 128>}]} {
    %c0_i32 = arith.constant 0 : i32
    %0 = arith.cmpi eq, %arg1, %c0_i32 : i32
    %1 = arith.extui %0 : i1 to i32
    %c0_i32_0 = arith.constant 0 : i32
    %2 = arith.cmpi ne, %1, %c0_i32_0 : i32
    scf.if %2 {
      %cst_10 = arith.constant 0.000000e+00 : f32
      %12 = vector.broadcast %cst_10 : f32 to vector<256x128xf32>
      %c0_11 = arith.constant 0 : index
      %c0_12 = arith.constant 0 : index
      %13 = vector.load %arg6[%c0_11, %c0_12] : memref<256x128xf32, #tpu.memory_space<vmem>>, vector<256x128xf32>
      tpu.vector_store %arg6[%c0_11, %c0_12], %12 {strides = array<i32>} : memref<256x128xf32, #tpu.memory_space<vmem>>, vector<256x128xf32>,
    } else {
    }
    %c0 = arith.constant 0 : index
    %c0_1 = arith.constant 0 : index
    %3 = vector.load %arg6[%c0, %c0_1] : memref<256x128xf32, #tpu.memory_space<vmem>>, vector<256x128xf32>
    %c0_2 = arith.constant 0 : index
    %c0_3 = arith.constant 0 : index
    %4 = vector.load %arg2[%c0_2, %c0_3] : memref<256x256xf32, #tpu.memory_space<vmem>>, vector<256x256xf32>
    %c0_4 = arith.constant 0 : index
    %c0_5 = arith.constant 0 : index
    %5 = vector.load %arg3[%c0_4, %c0_5] : memref<256x128xf32, #tpu.memory_space<vmem>>, vector<256x128xf32>
    %cst = arith.constant dense<0.000000e+00> : vector<256x128xf32>
    %6 = tpu.matmul %4, %5, %cst {dimension_numbers = #tpu.dot_dimension_numbers<[1], [0], [0], [1], [0, 0, 1, 1], [], []>} : vector<256x256xf32>, vector<256x128xf32>, vector<256x128xf32> -> vector<256x128xf32>
    %7 = arith.addf %3, %6 : vector<256x128xf32>
    %c0_6 = arith.constant 0 : index
    %c0_7 = arith.constant 0 : index
    %8 = vector.load %arg6[%c0_6, %c0_7] : memref<256x128xf32, #tpu.memory_space<vmem>>, vector<256x128xf32>
    tpu.vector_store %arg6[%c0_6, %c0_7], %7 {strides = array<i32>} : memref<256x128xf32, #tpu.memory_space<vmem>>, vector<256x128xf32>,
    %c0_i32_8 = arith.constant 0 : i32
    %9 = arith.cmpi eq, %arg1, %c0_i32_8 : i32
    %10 = arith.extui %9 : i1 to i32
    %c0_i32_9 = arith.constant 0 : i32
    %11 = arith.cmpi ne, %10, %c0_i32_9 : i32
    scf.if %11 {
      %c0_10 = arith.constant 0 : index
      %c0_11 = arith.constant 0 : index
      %12 = vector.load %arg6[%c0_10, %c0_11] : memref<256x128xf32, #tpu.memory_space<vmem>>, vector<256x128xf32>
      %c0_12 = arith.constant 0 : index
      %c0_13 = arith.constant 0 : index
      %13 = vector.load %arg4[%c0_12, %c0_13] : memref<1x128xf32, #tpu.memory_space<vmem>>, vector<1x128xf32>
      %14 = vector.broadcast %13 : vector<1x128xf32> to vector<256x128xf32>
      %15 = arith.addf %12, %14 : vector<256x128xf32>
      %c0_14 = arith.constant 0 : index
      %c0_15 = arith.constant 0 : index
      %16 = vector.load %arg5[%c0_14, %c0_15] : memref<256x128xf32, #tpu.memory_space<vmem>>, vector<256x128xf32>
      tpu.vector_store %arg5[%c0_14, %c0_15], %15 {strides = array<i32>} : memref<256x128xf32, #tpu.memory_space<vmem>>, vector<256x128xf32>,
    } else {
    }
    return
  }
  func.func @transform_0(%arg0: i32, %arg1: i32) -> (i32, i32) {
    %c0_i32 = arith.constant 0 : i32
    return %arg0, %arg1 : i32, i32
  }
  func.func @transform_1(%arg0: i32, %arg1: i32) -> (i32, i32) {
    %c0_i32 = arith.constant 0 : i32
    %c0_i32_0 = arith.constant 0 : i32
    return %arg1, %c0_i32 : i32, i32
  }
  func.func @transform_2(%arg0: i32, %arg1: i32) -> (i32, i32) {
    %c0_i32 = arith.constant 0 : i32
    %c0_i32_0 = arith.constant 0 : i32
    %c0_i32_1 = arith.constant 0 : i32
    return %c0_i32, %c0_i32_0 : i32, i32
  }
  func.func @transform_3(%arg0: i32, %arg1: i32) -> (i32, i32) {
    %c0_i32 = arith.constant 0 : i32
    %c0_i32_0 = arith.constant 0 : i32
    return %arg0, %c0_i32 : i32, i32
  }
}

</mosaic_0001>

<llo_original>
// kernel: gcn_forward.4
$region0: #{gcn_forward.4}
  #allocation0 [shape = 'u32[]', space=smem, size = 0x4, offset = 0x4, fixed_abs, tag = 'smem constant byte address 0x4 - core index']
  #allocation1 [shape = 'u32[144,128]{1,0:T(1,128)}', space=vmem, size = 0x12000, scoped, tag = 'internal scratch']
  #allocation2 [shape = 'f32[256,128]{1,0:T(8,128)}', space=vmem, size = 0x20000, scoped, tag = 'scratch operand']
  %s0 = inlined_call_operand.vmem [shape: f32[256,128], index: 0, kind: input, shape index: {}]
  %s1 = inlined_call_operand.vmem [shape: f32[128,128], index: 1, kind: input, shape index: {}]
  %s2 = inlined_call_operand.vmem [shape: f32[256,128], index: 2, kind: output, shape index: {}]
  %s3 = sld [smem:[#allocation0]]
  $region26: #{gcn_forward.4} parent=0
    _
  %s5 = ssub.s32 1, %s3
  %s6 = scalar_select 0, %s5, %s3
  // Predicated region
  $region2: #{gcn_forward.4} parent=0 // pred_check
    _
  $region3: #{gcn_forward.4} parent=0 // pred_check_branch
    %8 = sbr.rel (0) target = $region5
  $region4: #{gcn_forward.4} parent=0 // pred_region
    _
  $region5: #{gcn_forward.4} parent=0 // pred_fallthru
    _
  // Predicated region
  $region6: #{gcn_forward.4} parent=0 // pred_check
    _
  $region7: #{gcn_forward.4} parent=0 // pred_check_branch
    %10 = sbr.rel (0) target = $region9
  $region8: #{gcn_forward.4} parent=0 // pred_region
    _
  $region9: #{gcn_forward.4} parent=0 // pred_fallthru
    _
  %p11 = scmp.eq.s32.totalorder 0, 0
  // Predicated region
  $region10: #{gcn_forward.4} parent=0 // pred_check
    %p12 = pneg %p11
  $region11: #{gcn_forward.4} parent=0 // pred_check_branch
    %14 = sbr.rel (%p12) target = $region13
  $region12: #{gcn_forward.4} parent=0 // pred_region
    %15 = vst [vmem:[#allocation2] sm:$0xff] 0.0
    %16 = vst [vmem:[#allocation2 + $0x8] sm:$0xff] 0.0
    %17 = vst [vmem:[#allocation2 + $0x10] sm:$0xff] 0.0
    %18 = vst [vmem:[#allocation2 + $0x18] sm:$0xff] 0.0
    %19 = vst [vmem:[#allocation2 + $0x20] sm:$0xff] 0.0
    %20 = vst [vmem:[#allocation2 + $0x28] sm:$0xff] 0.0
    %21 = vst [vmem:[#allocation2 + $0x30] sm:$0xff] 0.0
    %22 = vst [vmem:[#allocation2 + $0x38] sm:$0xff] 0.0
    %23 = vst [vmem:[#allocation2 + $0x40] sm:$0xff] 0.0
    %24 = vst [vmem:[#allocation2 + $0x48] sm:$0xff] 0.0
    %25 = vst [vmem:[#allocation2 + $0x50] sm:$0xff] 0.0
    %26 = vst [vmem:[#allocation2 + $0x58] sm:$0xff] 0.0
    %27 = vst [vmem:[#allocation2 + $0x60] sm:$0xff] 0.0
    %28 = vst [vmem:[#allocation2 + $0x68] sm:$0xff] 0.0
    %29 = vst [vmem:[#allocation2 + $0x70] sm:$0xff] 0.0
    %30 = vst [vmem:[#allocation2 + $0x78] sm:$0xff] 0.0
    %31 = vst [vmem:[#allocation2 + $0x80] sm:$0xff] 0.0
    %32 = vst [vmem:[#allocation2 + $0x88] sm:$0xff] 0.0
    %33 = vst [vmem:[#allocation2 + $0x90] sm:$0xff] 0.0
    %34 = vst [vmem:[#allocation2 + $0x98] sm:$0xff] 0.0
    %35 = vst [vmem:[#allocation2 + $0xa0] sm:$0xff] 0.0
    %36 = vst [vmem:[#allocation2 + $0xa8] sm:$0xff] 0.0
    %37 = vst [vmem:[#allocation2 + $0xb0] sm:$0xff] 0.0
    %38 = vst [vmem:[#allocation2 + $0xb8] sm:$0xff] 0.0
    %39 = vst [vmem:[#allocation2 + $0xc0] sm:$0xff] 0.0
    %40 = vst [vmem:[#allocation2 + $0xc8] sm:$0xff] 0.0
    %41 = vst [vmem:[#allocation2 + $0xd0] sm:$0xff] 0.0
    %42 = vst [vmem:[#allocation2 + $0xd8] sm:$0xff] 0.0
    %43 = vst [vmem:[#allocation2 + $0xe0] sm:$0xff] 0.0
    %44 = vst [vmem:[#allocation2 + $0xe8] sm:$0xff] 0.0
    %45 = vst [vmem:[#allocation2 + $0xf0] sm:$0xff] 0.0
    %46 = vst [vmem:[#allocation2 + $0xf8] sm:$0xff] 0.0
  $region13: #{gcn_forward.4} parent=0 // pred_fallthru
    _
  %v47 = vld [vmem:[#allocation2] sm:$0xff]
  %v48 = vld [vmem:[#allocation2 + $0x8] sm:$0xff]
  %v49 = vld [vmem:[#allocation2 + $0x10] sm:$0xff]
  %v50 = vld [vmem:[#allocation2 + $0x18] sm:$0xff]
  %v51 = vld [vmem:[#allocation2 + $0x20] sm:$0xff]
  %v52 = vld [vmem:[#allocation2 + $0x28] sm:$0xff]
  %v53 = vld [vmem:[#allocation2 + $0x30] sm:$0xff]
  %v54 = vld [vmem:[#allocation2 + $0x38] sm:$0xff]
  %v55 = vld [vmem:[#allocation2 + $0x40] sm:$0xff]
  %v56 = vld [vmem:[#allocation2 + $0x48] sm:$0xff]
  %v57 = vld [vmem:[#allocation2 + $0x50] sm:$0xff]
  %v58 = vld [vmem:[#allocation2 + $0x58] sm:$0xff]
  %v59 = vld [vmem:[#allocation2 + $0x60] sm:$0xff]
  %v60 = vld [vmem:[#allocation2 + $0x68] sm:$0xff]
  %v61 = vld [vmem:[#allocation2 + $0x70] sm:$0xff]
  %v62 = vld [vmem:[#allocation2 + $0x78] sm:$0xff]
  %v63 = vld [vmem:[#allocation2 + $0x80] sm:$0xff]
  %v64 = vld [vmem:[#allocation2 + $0x88] sm:$0xff]
  %v65 = vld [vmem:[#allocation2 + $0x90] sm:$0xff]
  %v66 = vld [vmem:[#allocation2 + $0x98] sm:$0xff]
  %v67 = vld [vmem:[#allocation2 + $0xa0] sm:$0xff]
  %v68 = vld [vmem:[#allocation2 + $0xa8] sm:$0xff]
  %v69 = vld [vmem:[#allocation2 + $0xb0] sm:$0xff]
  %v70 = vld [vmem:[#allocation2 + $0xb8] sm:$0xff]
  %v71 = vld [vmem:[#allocation2 + $0xc0] sm:$0xff]
  %v72 = vld [vmem:[#allocation2 + $0xc8] sm:$0xff]
  %v73 = vld [vmem:[#allocation2 + $0xd0] sm:$0xff]
  %v74 = vld [vmem:[#allocation2 + $0xd8] sm:$0xff]
  %v75 = vld [vmem:[#allocation2 + $0xe0] sm:$0xff]
  %v76 = vld [vmem:[#allocation2 + $0xe8] sm:$0xff]
  %v77 = vld [vmem:[#allocation2 + $0xf0] sm:$0xff]
  %v78 = vld [vmem:[#allocation2 + $0xf8] sm:$0xff]
  %v79 = vld [vmem:[%s0] sm:$0xff]
  %v80 = vld [vmem:[%s0 + $0x8] sm:$0xff]
  %v81 = vld [vmem:[%s0 + $0x10] sm:$0xff]
  %v82 = vld [vmem:[%s0 + $0x18] sm:$0xff]
  %v83 = vld [vmem:[%s0 + $0x20] sm:$0xff]
  %v84 = vld [vmem:[%s0 + $0x28] sm:$0xff]
  %v85 = vld [vmem:[%s0 + $0x30] sm:$0xff]
  %v86 = vld [vmem:[%s0 + $0x38] sm:$0xff]
  %v87 = vld [vmem:[%s0 + $0x40] sm:$0xff]
  %v88 = vld [vmem:[%s0 + $0x48] sm:$0xff]
  %v89 = vld [vmem:[%s0 + $0x50] sm:$0xff]
  %v90 = vld [vmem:[%s0 + $0x58] sm:$0xff]
  %v91 = vld [vmem:[%s0 + $0x60] sm:$0xff]
  %v92 = vld [vmem:[%s0 + $0x68] sm:$0xff]
  %v93 = vld [vmem:[%s0 + $0x70] sm:$0xff]
  %v94 = vld [vmem:[%s0 + $0x78] sm:$0xff]
  %v95 = vld [vmem:[%s0 + $0x80] sm:$0xff]
  %v96 = vld [vmem:[%s0 + $0x88] sm:$0xff]
  %v97 = vld [vmem:[%s0 + $0x90] sm:$0xff]
  %v98 = vld [vmem:[%s0 + $0x98] sm:$0xff]
  %v99 = vld [vmem:[%s0 + $0xa0] sm:$0xff]
  %v100 = vld [vmem:[%s0 + $0xa8] sm:$0xff]
  %v101 = vld [vmem:[%s0 + $0xb0] sm:$0xff]
  %v102 = vld [vmem:[%s0 + $0xb8] sm:$0xff]
  %v103 = vld [vmem:[%s0 + $0xc0] sm:$0xff]
  %v104 = vld [vmem:[%s0 + $0xc8] sm:$0xff]
  %v105 = vld [vmem:[%s0 + $0xd0] sm:$0xff]
  %v106 = vld [vmem:[%s0 + $0xd8] sm:$0xff]
  %v107 = vld [vmem:[%s0 + $0xe0] sm:$0xff]
  %v108 = vld [vmem:[%s0 + $0xe8] sm:$0xff]
  %v109 = vld [vmem:[%s0 + $0xf0] sm:$0xff]
  %v110 = vld [vmem:[%s0 + $0xf8] sm:$0xff]
  %v111 = vld [vmem:[%s1] sm:$0xff]
  %v112 = vld [vmem:[%s1 + $0x8] sm:$0xff]
  %v113 = vld [vmem:[%s1 + $0x10] sm:$0xff]
  %v114 = vld [vmem:[%s1 + $0x18] sm:$0xff]
  %v115 = vld [vmem:[%s1 + $0x20] sm:$0xff]
  %v116 = vld [vmem:[%s1 + $0x28] sm:$0xff]
  %v117 = vld [vmem:[%s1 + $0x30] sm:$0xff]
  %v118 = vld [vmem:[%s1 + $0x38] sm:$0xff]
  %v119 = vld [vmem:[%s1 + $0x40] sm:$0xff]
  %v120 = vld [vmem:[%s1 + $0x48] sm:$0xff]
  %v121 = vld [vmem:[%s1 + $0x50] sm:$0xff]
  %v122 = vld [vmem:[%s1 + $0x58] sm:$0xff]
  %v123 = vld [vmem:[%s1 + $0x60] sm:$0xff]
  %v124 = vld [vmem:[%s1 + $0x68] sm:$0xff]
  %v125 = vld [vmem:[%s1 + $0x70] sm:$0xff]
  %v126 = vld [vmem:[%s1 + $0x78] sm:$0xff]
  %127 = vmatprep.subr.mxu0 0.0
  %128 = vmatpush1.msra.mxu0 %v111
  %129 = vmatprep.subr.mxu0 0.0
  %130 = vmatpush1.msra.mxu0 %v112
  %131 = vmatprep.subr.mxu0 0.0
  %132 = vmatpush1.msra.mxu0 %v113
  %133 = vmatprep.subr.mxu0 0.0
  %134 = vmatpush1.msra.mxu0 %v114
  %135 = vmatprep.subr.mxu0 0.0
  %136 = vmatpush1.msra.mxu0 %v115
  %137 = vmatprep.subr.mxu0 0.0
  %138 = vmatpush1.msra.mxu0 %v116
  %139 = vmatprep.subr.mxu0 0.0
  %140 = vmatpush1.msra.mxu0 %v117
  %141 = vmatprep.subr.mxu0 0.0
  %142 = vmatpush1.msra.mxu0 %v118
  %143 = vmatprep.subr.mxu0 0.0
  %144 = vmatpush1.msra.mxu0 %v119
  %145 = vmatprep.subr.mxu0 0.0
  %146 = vmatpush1.msra.mxu0 %v120
  %147 = vmatprep.subr.mxu0 0.0
  %148 = vmatpush1.msra.mxu0 %v121
  %149 = vmatprep.subr.mxu0 0.0
  %150 = vmatpush1.msra.mxu0 %v122
  %151 = vmatprep.subr.mxu0 0.0
  %152 = vmatpush1.msra.mxu0 %v123
  %153 = vmatprep.subr.mxu0 0.0
  %154 = vmatpush1.msra.mxu0 %v124
  %155 = vmatprep.subr.mxu0 0.0
  %156 = vmatpush1.msra.mxu0 %v125
  %157 = vmatprep.subr.mxu0 0.0
  %158 = vmatpush1.msra.mxu0 %v126
  %159 = vmatprep.subr.mxu0 0.0
  %160 = vmatpush1.msra.mxu0 0.0
  %161 = vmatprep.subr.mxu0 0.0
  %162 = vmatpush1.msra.mxu0 0.0
  %163 = vmatprep.subr.mxu0 0.0
  %164 = vmatpush1.msra.mxu0 0.0
  %165 = vmatprep.subr.mxu0 0.0
  %166 = vmatpush1.msra.mxu0 0.0
  %167 = vmatprep.subr.mxu0 0.0
  %168 = vmatpush1.msra.mxu0 0.0
  %169 = vmatprep.subr.mxu0 0.0
  %170 = vmatpush1.msra.mxu0 0.0
  %171 = vmatprep.subr.mxu0 0.0
  %172 = vmatpush1.msra.mxu0 0.0
  %173 = vmatprep.subr.mxu0 0.0
  %174 = vmatpush1.msra.mxu0 0.0
  %175 = vmatprep.subr.mxu0 0.0
  %176 = vmatpush1.msra.mxu0 0.0
  %177 = vmatprep.subr.mxu0 0.0
  %178 = vmatpush1.msra.mxu0 0.0
  %179 = vmatprep.subr.mxu0 0.0
  %180 = vmatpush1.msra.mxu0 0.0
  %181 = vmatprep.subr.mxu0 0.0
  %182 = vmatpush1.msra.mxu0 0.0
  %183 = vmatprep.subr.mxu0 0.0
  %184 = vmatpush1.msra.mxu0 0.0
  %185 = vmatprep.subr.mxu0 0.0
  %186 = vmatpush1.msra.mxu0 0.0
  %187 = vmatprep.subr.mxu0 0.0
  %188 = vmatpush1.msra.mxu0 0.0
  %189 = vmatprep.subr.mxu0 0.0
  %190 = vmatpush1.msra.mxu0 0.0
  %191 = vmatprep.mubr.f32.mxu0 0.0
  %192 = vmatmul.mubr.f32.gmra.mrb[0].mxu0 %v79
  %v193 = vpop.f32.mrb[0].mxu0
  %v194 = vadd.f32 0.0, %v193
  %v195 = vpop.f32.mrb[0].mxu0
  %196 = vmatprep.mubr.f32.mxu0 0.0
  %197 = vmatmul.mubr.f32.gmra.mrb[0].mxu0 %v80
  %v198 = vpop.f32.mrb[0].mxu0
  %v199 = vadd.f32 0.0, %v198
  %v200 = vpop.f32.mrb[0].mxu0
  %201 = vmatprep.mubr.f32.mxu0 0.0
  %202 = vmatmul.mubr.f32.gmra.mrb[0].mxu0 %v81
  %v203 = vpop.f32.mrb[0].mxu0
  %v204 = vadd.f32 0.0, %v203
  %v205 = vpop.f32.mrb[0].mxu0
  %206 = vmatprep.mubr.f32.mxu0 0.0
  %207 = vmatmul.mubr.f32.gmra.mrb[0].mxu0 %v82
  %v208 = vpop.f32.mrb[0].mxu0
  %v209 = vadd.f32 0.0, %v208
  %v210 = vpop.f32.mrb[0].mxu0
  %211 = vmatprep.mubr.f32.mxu0 0.0
  %212 = vmatmul.mubr.f32.gmra.mrb[0].mxu0 %v83
  %v213 = vpop.f32.mrb[0].mxu0
  %v214 = vadd.f32 0.0, %v213
  %v215 = vpop.f32.mrb[0].mxu0
  %216 = vmatprep.mubr.f32.mxu0 0.0
  %217 = vmatmul.mubr.f32.gmra.mrb[0].mxu0 %v84
  %v218 = vpop.f32.mrb[0].mxu0
  %v219 = vadd.f32 0.0, %v218
  %v220 = vpop.f32.mrb[0].mxu0
  %221 = vmatprep.mubr.f32.mxu0 0.0
  %222 = vmatmul.mubr.f32.gmra.mrb[0].mxu0 %v85
  %v223 = vpop.f32.mrb[0].mxu0
  %v224 = vadd.f32 0.0, %v223
  %v225 = vpop.f32.mrb[0].mxu0
  %226 = vmatprep.mubr.f32.mxu0 0.0
  %227 = vmatmul.mubr.f32.gmra.mrb[0].mxu0 %v86
  %v228 = vpop.f32.mrb[0].mxu0
  %v229 = vadd.f32 0.0, %v228
  %v230 = vpop.f32.mrb[0].mxu0
  %231 = vmatprep.mubr.f32.mxu0 0.0
  %232 = vmatmul.mubr.f32.gmra.mrb[0].mxu0 %v87
  %v233 = vpop.f32.mrb[0].mxu0
  %v234 = vadd.f32 0.0, %v233
  %v235 = vpop.f32.mrb[0].mxu0
  %236 = vmatprep.mubr.f32.mxu0 0.0
  %237 = vmatmul.mubr.f32.gmra.mrb[0].mxu0 %v88
  %v238 = vpop.f32.mrb[0].mxu0
  %v239 = vadd.f32 0.0, %v238
  %v240 = vpop.f32.mrb[0].mxu0
  %241 = vmatprep.mubr.f32.mxu0 0.0
  %242 = vmatmul.mubr.f32.gmra.mrb[0].mxu0 %v89
  %v243 = vpop.f32.mrb[0].mxu0
  %v244 = vadd.f32 0.0, %v243
  %v245 = vpop.f32.mrb[0].mxu0
  %246 = vmatprep.mubr.f32.mxu0 0.0
  %247 = vmatmul.mubr.f32.gmra.mrb[0].mxu0 %v90
  %v248 = vpop.f32.mrb[0].mxu0
  %v249 = vadd.f32 0.0, %v248
  %v250 = vpop.f32.mrb[0].mxu0
  %251 = vmatprep.mubr.f32.mxu0 0.0
  %252 = vmatmul.mubr.f32.gmra.mrb[0].mxu0 %v91
  %v253 = vpop.f32.mrb[0].mxu0
  %v254 = vadd.f32 0.0, %v253
  %v255 = vpop.f32.mrb[0].mxu0
  %256 = vmatprep.mubr.f32.mxu0 0.0
  %257 = vmatmul.mubr.f32.gmra.mrb[0].mxu0 %v92
  %v258 = vpop.f32.mrb[0].mxu0
  %v259 = vadd.f32 0.0, %v258
  %v260 = vpop.f32.mrb[0].mxu0
  %261 = vmatprep.mubr.f32.mxu0 0.0
  %262 = vmatmul.mubr.f32.gmra.mrb[0].mxu0 %v93
  %v263 = vpop.f32.mrb[0].mxu0
  %v264 = vadd.f32 0.0, %v263
  %v265 = vpop.f32.mrb[0].mxu0
  %266 = vmatprep.mubr.f32.mxu0 0.0
  %267 = vmatmul.mubr.f32.gmra.mrb[0].mxu0 %v94
  %v268 = vpop.f32.mrb[0].mxu0
  %v269 = vadd.f32 0.0, %v268
  %v270 = vpop.f32.mrb[0].mxu0
  %271 = vmatprep.mubr.f32.mxu0 0.0
  %272 = vmatmul.mubr.f32.gmra.mrb[0].mxu0 %v95
  %v273 = vpop.f32.mrb[0].mxu0
  %v274 = vadd.f32 0.0, %v273
  %v275 = vpop.f32.mrb[0].mxu0
  %276 = vmatprep.mubr.f32.mxu0 0.0
  %277 = vmatmul.mubr.f32.gmra.mrb[0].mxu0 %v96
  %v278 = vpop.f32.mrb[0].mxu0
  %v279 = vadd.f32 0.0, %v278
  %v280 = vpop.f32.mrb[0].mxu0
  %281 = vmatprep.mubr.f32.mxu0 0.0
  %282 = vmatmul.mubr.f32.gmra.mrb[0].mxu0 %v97
  %v283 = vpop.f32.mrb[0].mxu0
  %v284 = vadd.f32 0.0, %v283
  %v285 = vpop.f32.mrb[0].mxu0
  %286 = vmatprep.mubr.f32.mxu0 0.0
  %287 = vmatmul.mubr.f32.gmra.mrb[0].mxu0 %v98
  %v288 = vpop.f32.mrb[0].mxu0
  %v289 = vadd.f32 0.0, %v288
  %v290 = vpop.f32.mrb[0].mxu0
  %291 = vmatprep.mubr.f32.mxu0 0.0
  %292 = vmatmul.mubr.f32.gmra.mrb[0].mxu0 %v99
  %v293 = vpop.f32.mrb[0].mxu0
  %v294 = vadd.f32 0.0, %v293
  %v295 = vpop.f32.mrb[0].mxu0
  %296 = vmatprep.mubr.f32.mxu0 0.0
  %297 = vmatmul.mubr.f32.gmra.mrb[0].mxu0 %v100
  %v298 = vpop.f32.mrb[0].mxu0
  %v299 = vadd.f32 0.0, %v298
  %v300 = vpop.f32.mrb[0].mxu0
  %301 = vmatprep.mubr.f32.mxu0 0.0
  %302 = vmatmul.mubr.f32.gmra.mrb[0].mxu0 %v101
  %v303 = vpop.f32.mrb[0].mxu0
  %v304 = vadd.f32 0.0, %v303
  %v305 = vpop.f32.mrb[0].mxu0
  %306 = vmatprep.mubr.f32.mxu0 0.0
  %307 = vmatmul.mubr.f32.gmra.mrb[0].mxu0 %v102
  %v308 = vpop.f32.mrb[0].mxu0
  %v309 = vadd.f32 0.0, %v308
  %v310 = vpop.f32.mrb[0].mxu0
  %311 = vmatprep.mubr.f32.mxu0 0.0
  %312 = vmatmul.mubr.f32.gmra.mrb[0].mxu0 %v103
  %v313 = vpop.f32.mrb[0].mxu0
  %v314 = vadd.f32 0.0, %v313
  %v315 = vpop.f32.mrb[0].mxu0
  %316 = vmatprep.mubr.f32.mxu0 0.0
  %317 = vmatmul.mubr.f32.gmra.mrb[0].mxu0 %v104
  %v318 = vpop.f32.mrb[0].mxu0
  %v319 = vadd.f32 0.0, %v318
  %v320 = vpop.f32.mrb[0].mxu0
  %321 = vmatprep.mubr.f32.mxu0 0.0
  %322 = vmatmul.mubr.f32.gmra.mrb[0].mxu0 %v105
  %v323 = vpop.f32.mrb[0].mxu0
  %v324 = vadd.f32 0.0, %v323
  %v325 = vpop.f32.mrb[0].mxu0
  %326 = vmatprep.mubr.f32.mxu0 0.0
  %327 = vmatmul.mubr.f32.gmra.mrb[0].mxu0 %v106
  %v328 = vpop.f32.mrb[0].mxu0
  %v329 = vadd.f32 0.0, %v328
  %v330 = vpop.f32.mrb[0].mxu0
  %331 = vmatprep.mubr.f32.mxu0 0.0
  %332 = vmatmul.mubr.f32.gmra.mrb[0].mxu0 %v107
  %v333 = vpop.f32.mrb[0].mxu0
  %v334 = vadd.f32 0.0, %v333
  %v335 = vpop.f32.mrb[0].mxu0
  %336 = vmatprep.mubr.f32.mxu0 0.0
  %337 = vmatmul.mubr.f32.gmra.mrb[0].mxu0 %v108
  %v338 = vpop.f32.mrb[0].mxu0
  %v339 = vadd.f32 0.0, %v338
  %v340 = vpop.f32.mrb[0].mxu0
  %341 = vmatprep.mubr.f32.mxu0 0.0
  %342 = vmatmul.mubr.f32.gmra.mrb[0].mxu0 %v109
  %v343 = vpop.f32.mrb[0].mxu0
  %v344 = vadd.f32 0.0, %v343
  %v345 = vpop.f32.mrb[0].mxu0
  %346 = vmatprep.mubr.f32.mxu0 0.0
  %347 = vmatmul.mubr.f32.gmra.mrb[0].mxu0 %v110
  %v348 = vpop.f32.mrb[0].mxu0
  %v349 = vadd.f32 0.0, %v348
  %v350 = vpop.f32.mrb[0].mxu0
  %351 = vdwg.mxu0
  %v352 = vadd.f32 %v47, %v194
  %v353 = vadd.f32 %v48, %v199
  %v354 = vadd.f32 %v49, %v204
  %v355 = vadd.f32 %v50, %v209
  %v356 = vadd.f32 %v51, %v214
  %v357 = vadd.f32 %v52, %v219
  %v358 = vadd.f32 %v53, %v224
  %v359 = vadd.f32 %v54, %v229
  %v360 = vadd.f32 %v55, %v234
  %v361 = vadd.f32 %v56, %v239
  %v362 = vadd.f32 %v57, %v244
  %v363 = vadd.f32 %v58, %v249
  %v364 = vadd.f32 %v59, %v254
  %v365 = vadd.f32 %v60, %v259
  %v366 = vadd.f32 %v61, %v264
  %v367 = vadd.f32 %v62, %v269
  %v368 = vadd.f32 %v63, %v274
  %v369 = vadd.f32 %v64, %v279
  %v370 = vadd.f32 %v65, %v284
  %v371 = vadd.f32 %v66, %v289
  %v372 = vadd.f32 %v67, %v294
  %v373 = vadd.f32 %v68, %v299
  %v374 = vadd.f32 %v69, %v304
  %v375 = vadd.f32 %v70, %v309
  %v376 = vadd.f32 %v71, %v314
  %v377 = vadd.f32 %v72, %v319
  %v378 = vadd.f32 %v73, %v324
  %v379 = vadd.f32 %v74, %v329
  %v380 = vadd.f32 %v75, %v334
  %v381 = vadd.f32 %v76, %v339
  %v382 = vadd.f32 %v77, %v344
  %v383 = vadd.f32 %v78, %v349
  %384 = vst [vmem:[#allocation2] sm:$0xff] %v352
  %385 = vst [vmem:[#allocation2 + $0x8] sm:$0xff] %v353
  %386 = vst [vmem:[#allocation2 + $0x10] sm:$0xff] %v354
  %387 = vst [vmem:[#allocation2 + $0x18] sm:$0xff] %v355
  %388 = vst [vmem:[#allocation2 + $0x20] sm:$0xff] %v356
  %389 = vst [vmem:[#allocation2 + $0x28] sm:$0xff] %v357
  %390 = vst [vmem:[#allocation2 + $0x30] sm:$0xff] %v358
  %391 = vst [vmem:[#allocation2 + $0x38] sm:$0xff] %v359
  %392 = vst [vmem:[#allocation2 + $0x40] sm:$0xff] %v360
  %393 = vst [vmem:[#allocation2 + $0x48] sm:$0xff] %v361
  %394 = vst [vmem:[#allocation2 + $0x50] sm:$0xff] %v362
  %395 = vst [vmem:[#allocation2 + $0x58] sm:$0xff] %v363
  %396 = vst [vmem:[#allocation2 + $0x60] sm:$0xff] %v364
  %397 = vst [vmem:[#allocation2 + $0x68] sm:$0xff] %v365
  %398 = vst [vmem:[#allocation2 + $0x70] sm:$0xff] %v366
  %399 = vst [vmem:[#allocation2 + $0x78] sm:$0xff] %v367
  %400 = vst [vmem:[#allocation2 + $0x80] sm:$0xff] %v368
  %401 = vst [vmem:[#allocation2 + $0x88] sm:$0xff] %v369
  %402 = vst [vmem:[#allocation2 + $0x90] sm:$0xff] %v370
  %403 = vst [vmem:[#allocation2 + $0x98] sm:$0xff] %v371
  %404 = vst [vmem:[#allocation2 + $0xa0] sm:$0xff] %v372
  %405 = vst [vmem:[#allocation2 + $0xa8] sm:$0xff] %v373
  %406 = vst [vmem:[#allocation2 + $0xb0] sm:$0xff] %v374
  %407 = vst [vmem:[#allocation2 + $0xb8] sm:$0xff] %v375
  %408 = vst [vmem:[#allocation2 + $0xc0] sm:$0xff] %v376
  %409 = vst [vmem:[#allocation2 + $0xc8] sm:$0xff] %v377
  %410 = vst [vmem:[#allocation2 + $0xd0] sm:$0xff] %v378
  %411 = vst [vmem:[#allocation2 + $0xd8] sm:$0xff] %v379
  %412 = vst [vmem:[#allocation2 + $0xe0] sm:$0xff] %v380
  %413 = vst [vmem:[#allocation2 + $0xe8] sm:$0xff] %v381
  %414 = vst [vmem:[#allocation2 + $0xf0] sm:$0xff] %v382
  %415 = vst [vmem:[#allocation2 + $0xf8] sm:$0xff] %v383
  // Predicated region
  $region14: #{gcn_forward.4} parent=0 // pred_check
    %p416 = pneg %p11
  $region15: #{gcn_forward.4} parent=0 // pred_check_branch
    %418 = sbr.rel (%p416) target = $region17
  $region16: #{gcn_forward.4} parent=0 // pred_region
    %v419 = vld [vmem:[#allocation2] sm:$0xff]
    %v420 = vld [vmem:[#allocation2 + $0x8] sm:$0xff]
    %v421 = vld [vmem:[#allocation2 + $0x10] sm:$0xff]
    %v422 = vld [vmem:[#allocation2 + $0x18] sm:$0xff]
    %v423 = vld [vmem:[#allocation2 + $0x20] sm:$0xff]
    %v424 = vld [vmem:[#allocation2 + $0x28] sm:$0xff]
    %v425 = vld [vmem:[#allocation2 + $0x30] sm:$0xff]
    %v426 = vld [vmem:[#allocation2 + $0x38] sm:$0xff]
    %v427 = vld [vmem:[#allocation2 + $0x40] sm:$0xff]
    %v428 = vld [vmem:[#allocation2 + $0x48] sm:$0xff]
    %v429 = vld [vmem:[#allocation2 + $0x50] sm:$0xff]
    %v430 = vld [vmem:[#allocation2 + $0x58] sm:$0xff]
    %v431 = vld [vmem:[#allocation2 + $0x60] sm:$0xff]
    %v432 = vld [vmem:[#allocation2 + $0x68] sm:$0xff]
    %v433 = vld [vmem:[#allocation2 + $0x70] sm:$0xff]
    %v434 = vld [vmem:[#allocation2 + $0x78] sm:$0xff]
    %v435 = vld [vmem:[#allocation2 + $0x80] sm:$0xff]
    %v436 = vld [vmem:[#allocation2 + $0x88] sm:$0xff]
    %v437 = vld [vmem:[#allocation2 + $0x90] sm:$0xff]
    %v438 = vld [vmem:[#allocation2 + $0x98] sm:$0xff]
    %v439 = vld [vmem:[#allocation2 + $0xa0] sm:$0xff]
    %v440 = vld [vmem:[#allocation2 + $0xa8] sm:$0xff]
    %v441 = vld [vmem:[#allocation2 + $0xb0] sm:$0xff]
    %v442 = vld [vmem:[#allocation2 + $0xb8] sm:$0xff]
    %v443 = vld [vmem:[#allocation2 + $0xc0] sm:$0xff]
    %v444 = vld [vmem:[#allocation2 + $0xc8] sm:$0xff]
    %v445 = vld [vmem:[#allocation2 + $0xd0] sm:$0xff]
    %v446 = vld [vmem:[#allocation2 + $0xd8] sm:$0xff]
    %v447 = vld [vmem:[#allocation2 + $0xe0] sm:$0xff]
    %v448 = vld [vmem:[#allocation2 + $0xe8] sm:$0xff]
    %v449 = vld [vmem:[#allocation2 + $0xf0] sm:$0xff]
    %v450 = vld [vmem:[#allocation2 + $0xf8] sm:$0xff]
    %451 = vst [vmem:[%s2] sm:$0xff] %v419
    %452 = vst [vmem:[%s2 + $0x8] sm:$0xff] %v420
    %453 = vst [vmem:[%s2 + $0x10] sm:$0xff] %v421
    %454 = vst [vmem:[%s2 + $0x18] sm:$0xff] %v422
    %455 = vst [vmem:[%s2 + $0x20] sm:$0xff] %v423
    %456 = vst [vmem:[%s2 + $0x28] sm:$0xff] %v424
    %457 = vst [vmem:[%s2 + $0x30] sm:$0xff] %v425
    %458 = vst [vmem:[%s2 + $0x38] sm:$0xff] %v426
    %459 = vst [vmem:[%s2 + $0x40] sm:$0xff] %v427
    %460 = vst [vmem:[%s2 + $0x48] sm:$0xff] %v428
    %461 = vst [vmem:[%s2 + $0x50] sm:$0xff] %v429
    %462 = vst [vmem:[%s2 + $0x58] sm:$0xff] %v430
    %463 = vst [vmem:[%s2 + $0x60] sm:$0xff] %v431
    %464 = vst [vmem:[%s2 + $0x68] sm:$0xff] %v432
    %465 = vst [vmem:[%s2 + $0x70] sm:$0xff] %v433
    %466 = vst [vmem:[%s2 + $0x78] sm:$0xff] %v434
    %467 = vst [vmem:[%s2 + $0x80] sm:$0xff] %v435
    %468 = vst [vmem:[%s2 + $0x88] sm:$0xff] %v436
    %469 = vst [vmem:[%s2 + $0x90] sm:$0xff] %v437
    %470 = vst [vmem:[%s2 + $0x98] sm:$0xff] %v438
    %471 = vst [vmem:[%s2 + $0xa0] sm:$0xff] %v439
    %472 = vst [vmem:[%s2 + $0xa8] sm:$0xff] %v440
    %473 = vst [vmem:[%s2 + $0xb0] sm:$0xff] %v441
    %474 = vst [vmem:[%s2 + $0xb8] sm:$0xff] %v442
    %475 = vst [vmem:[%s2 + $0xc0] sm:$0xff] %v443
    %476 = vst [vmem:[%s2 + $0xc8] sm:$0xff] %v444
    %477 = vst [vmem:[%s2 + $0xd0] sm:$0xff] %v445
    %478 = vst [vmem:[%s2 + $0xd8] sm:$0xff] %v446
    %479 = vst [vmem:[%s2 + $0xe0] sm:$0xff] %v447
    %480 = vst [vmem:[%s2 + $0xe8] sm:$0xff] %v448
    %481 = vst [vmem:[%s2 + $0xf0] sm:$0xff] %v449
    %482 = vst [vmem:[%s2 + $0xf8] sm:$0xff] %v450
  $region17: #{gcn_forward.4} parent=0 // pred_fallthru
    _
  // Predicated region
  $region18: #{gcn_forward.4} parent=0 // pred_check
    _
  $region19: #{gcn_forward.4} parent=0 // pred_check_branch
    %484 = sbr.rel (0) target = $region21
  $region20: #{gcn_forward.4} parent=0 // pred_region
    _
  $region21: #{gcn_forward.4} parent=0 // pred_fallthru
    _
  // Predicated region
  $region22: #{gcn_forward.4} parent=0 // pred_check
    _
  $region23: #{gcn_forward.4} parent=0 // pred_check_branch
    %486 = sbr.rel (0) target = $region25
  $region24: #{gcn_forward.4} parent=0 // pred_region
    _
  $region25: #{gcn_forward.4} parent=0 // pred_fallthru
    _

// kernel: gcn_forward.7
$region0: #{gcn_forward.7}
  #allocation0 [shape = 'u32[]', space=smem, size = 0x4, offset = 0x4, fixed_abs, tag = 'smem constant byte address 0x4 - core index']
  #allocation1 [shape = 'u32[144,128]{1,0:T(1,128)}', space=vmem, size = 0x12000, scoped, tag = 'internal scratch']
  #allocation2 [shape = 'f32[256,128]{1,0:T(8,128)}', space=vmem, size = 0x20000, scoped, tag = 'scratch operand']
  %s0 = inlined_call_operand.vmem [shape: f32[256,256], index: 0, kind: input, shape index: {}]
  %s1 = inlined_call_operand.vmem [shape: f32[256,128], index: 1, kind: input, shape index: {}]
  %s2 = inlined_call_operand.vmem [shape: f32[1,128], index: 2, kind: input, shape index: {}]
  %s3 = inlined_call_operand.vmem [shape: f32[256,128], index: 3, kind: output, shape index: {}]
  %s4 = sld [smem:[#allocation0]]
  $region30: #{gcn_forward.7} parent=0
    _
  %s6 = ssub.s32 1, %s4
  %s7 = scalar_select 0, %s6, %s4
  // Predicated region
  $region2: #{gcn_forward.7} parent=0 // pred_check
    _
  $region3: #{gcn_forward.7} parent=0 // pred_check_branch
    %9 = sbr.rel (0) target = $region5
  $region4: #{gcn_forward.7} parent=0 // pred_region
    _
  $region5: #{gcn_forward.7} parent=0 // pred_fallthru
    _
  // Predicated region
  $region6: #{gcn_forward.7} parent=0 // pred_check
    _
  $region7: #{gcn_forward.7} parent=0 // pred_check_branch
    %11 = sbr.rel (0) target = $region9
  $region8: #{gcn_forward.7} parent=0 // pred_region
    _
  $region9: #{gcn_forward.7} parent=0 // pred_fallthru
    _
  // Predicated region
  $region10: #{gcn_forward.7} parent=0 // pred_check
    _
  $region11: #{gcn_forward.7} parent=0 // pred_check_branch
    %13 = sbr.rel (0) target = $region13
  $region12: #{gcn_forward.7} parent=0 // pred_region
    _
  $region13: #{gcn_forward.7} parent=0 // pred_fallthru
    _
  %p14 = scmp.eq.s32.totalorder 0, 0
  // Predicated region
  $region14: #{gcn_forward.7} parent=0 // pred_check
    %p15 = pneg %p14
  $region15: #{gcn_forward.7} parent=0 // pred_check_branch
    %17 = sbr.rel (%p15) target = $region17
  $region16: #{gcn_forward.7} parent=0 // pred_region
    %18 = vst [vmem:[#allocation2] sm:$0xff] 0.0
    %19 = vst [vmem:[#allocation2 + $0x8] sm:$0xff] 0.0
    %20 = vst [vmem:[#allocation2 + $0x10] sm:$0xff] 0.0
    %21 = vst [vmem:[#allocation2 + $0x18] sm:$0xff] 0.0
    %22 = vst [vmem:[#allocation2 + $0x20] sm:$0xff] 0.0
    %23 = vst [vmem:[#allocation2 + $0x28] sm:$0xff] 0.0
    %24 = vst [vmem:[#allocation2 + $0x30] sm:$0xff] 0.0
    %25 = vst [vmem:[#allocation2 + $0x38] sm:$0xff] 0.0
    %26 = vst [vmem:[#allocation2 + $0x40] sm:$0xff] 0.0
    %27 = vst [vmem:[#allocation2 + $0x48] sm:$0xff] 0.0
    %28 = vst [vmem:[#allocation2 + $0x50] sm:$0xff] 0.0
    %29 = vst [vmem:[#allocation2 + $0x58] sm:$0xff] 0.0
    %30 = vst [vmem:[#allocation2 + $0x60] sm:$0xff] 0.0
    %31 = vst [vmem:[#allocation2 + $0x68] sm:$0xff] 0.0
    %32 = vst [vmem:[#allocation2 + $0x70] sm:$0xff] 0.0
    %33 = vst [vmem:[#allocation2 + $0x78] sm:$0xff] 0.0
    %34 = vst [vmem:[#allocation2 + $0x80] sm:$0xff] 0.0
    %35 = vst [vmem:[#allocation2 + $0x88] sm:$0xff] 0.0
    %36 = vst [vmem:[#allocation2 + $0x90] sm:$0xff] 0.0
    %37 = vst [vmem:[#allocation2 + $0x98] sm:$0xff] 0.0
    %38 = vst [vmem:[#allocation2 + $0xa0] sm:$0xff] 0.0
    %39 = vst [vmem:[#allocation2 + $0xa8] sm:$0xff] 0.0
    %40 = vst [vmem:[#allocation2 + $0xb0] sm:$0xff] 0.0
    %41 = vst [vmem:[#allocation2 + $0xb8] sm:$0xff] 0.0
    %42 = vst [vmem:[#allocation2 + $0xc0] sm:$0xff] 0.0
    %43 = vst [vmem:[#allocation2 + $0xc8] sm:$0xff] 0.0
    %44 = vst [vmem:[#allocation2 + $0xd0] sm:$0xff] 0.0
    %45 = vst [vmem:[#allocation2 + $0xd8] sm:$0xff] 0.0
    %46 = vst [vmem:[#allocation2 + $0xe0] sm:$0xff] 0.0
    %47 = vst [vmem:[#allocation2 + $0xe8] sm:$0xff] 0.0
    %48 = vst [vmem:[#allocation2 + $0xf0] sm:$0xff] 0.0
    %49 = vst [vmem:[#allocation2 + $0xf8] sm:$0xff] 0.0
  $region17: #{gcn_forward.7} parent=0 // pred_fallthru
    _
  %v50 = vld [vmem:[#allocation2] sm:$0xff]
  %v51 = vld [vmem:[#allocation2 + $0x8] sm:$0xff]
  %v52 = vld [vmem:[#allocation2 + $0x10] sm:$0xff]
  %v53 = vld [vmem:[#allocation2 + $0x18] sm:$0xff]
  %v54 = vld [vmem:[#allocation2 + $0x20] sm:$0xff]
  %v55 = vld [vmem:[#allocation2 + $0x28] sm:$0xff]
  %v56 = vld [vmem:[#allocation2 + $0x30] sm:$0xff]
  %v57 = vld [vmem:[#allocation2 + $0x38] sm:$0xff]
  %v58 = vld [vmem:[#allocation2 + $0x40] sm:$0xff]
  %v59 = vld [vmem:[#allocation2 + $0x48] sm:$0xff]
  %v60 = vld [vmem:[#allocation2 + $0x50] sm:$0xff]
  %v61 = vld [vmem:[#allocation2 + $0x58] sm:$0xff]
  %v62 = vld [vmem:[#allocation2 + $0x60] sm:$0xff]
  %v63 = vld [vmem:[#allocation2 + $0x68] sm:$0xff]
  %v64 = vld [vmem:[#allocation2 + $0x70] sm:$0xff]
  %v65 = vld [vmem:[#allocation2 + $0x78] sm:$0xff]
  %v66 = vld [vmem:[#allocation2 + $0x80] sm:$0xff]
  %v67 = vld [vmem:[#allocation2 + $0x88] sm:$0xff]
  %v68 = vld [vmem:[#allocation2 + $0x90] sm:$0xff]
  %v69 = vld [vmem:[#allocation2 + $0x98] sm:$0xff]
  %v70 = vld [vmem:[#allocation2 + $0xa0] sm:$0xff]
  %v71 = vld [vmem:[#allocation2 + $0xa8] sm:$0xff]
  %v72 = vld [vmem:[#allocation2 + $0xb0] sm:$0xff]
  %v73 = vld [vmem:[#allocation2 + $0xb8] sm:$0xff]
  %v74 = vld [vmem:[#allocation2 + $0xc0] sm:$0xff]
  %v75 = vld [vmem:[#allocation2 + $0xc8] sm:$0xff]
  %v76 = vld [vmem:[#allocation2 + $0xd0] sm:$0xff]
  %v77 = vld [vmem:[#allocation2 + $0xd8] sm:$0xff]
  %v78 = vld [vmem:[#allocation2 + $0xe0] sm:$0xff]
  %v79 = vld [vmem:[#allocation2 + $0xe8] sm:$0xff]
  %v80 = vld [vmem:[#allocation2 + $0xf0] sm:$0xff]
  %v81 = vld [vmem:[#allocation2 + $0xf8] sm:$0xff]
  %v82 = vld [vmem:[%s0] sm:$0xff]
  %v83 = vld [vmem:[%s0 + $0x8] sm:$0xff]
  %v84 = vld [vmem:[%s0 + $0x10] sm:$0xff]
  %v85 = vld [vmem:[%s0 + $0x18] sm:$0xff]
  %v86 = vld [vmem:[%s0 + $0x20] sm:$0xff]
  %v87 = vld [vmem:[%s0 + $0x28] sm:$0xff]
  %v88 = vld [vmem:[%s0 + $0x30] sm:$0xff]
  %v89 = vld [vmem:[%s0 + $0x38] sm:$0xff]
  %v90 = vld [vmem:[%s0 + $0x40] sm:$0xff]
  %v91 = vld [vmem:[%s0 + $0x48] sm:$0xff]
  %v92 = vld [vmem:[%s0 + $0x50] sm:$0xff]
  %v93 = vld [vmem:[%s0 + $0x58] sm:$0xff]
  %v94 = vld [vmem:[%s0 + $0x60] sm:$0xff]
  %v95 = vld [vmem:[%s0 + $0x68] sm:$0xff]
  %v96 = vld [vmem:[%s0 + $0x70] sm:$0xff]
  %v97 = vld [vmem:[%s0 + $0x78] sm:$0xff]
  %v98 = vld [vmem:[%s0 + $0x80] sm:$0xff]
  %v99 = vld [vmem:[%s0 + $0x88] sm:$0xff]
  %v100 = vld [vmem:[%s0 + $0x90] sm:$0xff]
  %v101 = vld [vmem:[%s0 + $0x98] sm:$0xff]
  %v102 = vld [vmem:[%s0 + $0xa0] sm:$0xff]
  %v103 = vld [vmem:[%s0 + $0xa8] sm:$0xff]
  %v104 = vld [vmem:[%s0 + $0xb0] sm:$0xff]
  %v105 = vld [vmem:[%s0 + $0xb8] sm:$0xff]
  %v106 = vld [vmem:[%s0 + $0xc0] sm:$0xff]
  %v107 = vld [vmem:[%s0 + $0xc8] sm:$0xff]
  %v108 = vld [vmem:[%s0 + $0xd0] sm:$0xff]
  %v109 = vld [vmem:[%s0 + $0xd8] sm:$0xff]
  %v110 = vld [vmem:[%s0 + $0xe0] sm:$0xff]
  %v111 = vld [vmem:[%s0 + $0xe8] sm:$0xff]
  %v112 = vld [vmem:[%s0 + $0xf0] sm:$0xff]
  %v113 = vld [vmem:[%s0 + $0xf8] sm:$0xff]
  %v114 = vld [vmem:[%s0 + $0x100] sm:$0xff]
  %v115 = vld [vmem:[%s0 + $0x108] sm:$0xff]
  %v116 = vld [vmem:[%s0 + $0x110] sm:$0xff]
  %v117 = vld [vmem:[%s0 + $0x118] sm:$0xff]
  %v118 = vld [vmem:[%s0 + $0x120] sm:$0xff]
  %v119 = vld [vmem:[%s0 + $0x128] sm:$0xff]
  %v120 = vld [vmem:[%s0 + $0x130] sm:$0xff]
  %v121 = vld [vmem:[%s0 + $0x138] sm:$0xff]
  %v122 = vld [vmem:[%s0 + $0x140] sm:$0xff]
  %v123 = vld [vmem:[%s0 + $0x148] sm:$0xff]
  %v124 = vld [vmem:[%s0 + $0x150] sm:$0xff]
  %v125 = vld [vmem:[%s0 + $0x158] sm:$0xff]
  %v126 = vld [vmem:[%s0 + $0x160] sm:$0xff]
  %v127 = vld [vmem:[%s0 + $0x168] sm:$0xff]
  %v128 = vld [vmem:[%s0 + $0x170] sm:$0xff]
  %v129 = vld [vmem:[%s0 + $0x178] sm:$0xff]
  %v130 = vld [vmem:[%s0 + $0x180] sm:$0xff]
  %v131 = vld [vmem:[%s0 + $0x188] sm:$0xff]
  %v132 = vld [vmem:[%s0 + $0x190] sm:$0xff]
  %v133 = vld [vmem:[%s0 + $0x198] sm:$0xff]
  %v134 = vld [vmem:[%s0 + $0x1a0] sm:$0xff]
  %v135 = vld [vmem:[%s0 + $0x1a8] sm:$0xff]
  %v136 = vld [vmem:[%s0 + $0x1b0] sm:$0xff]
  %v137 = vld [vmem:[%s0 + $0x1b8] sm:$0xff]
  %v138 = vld [vmem:[%s0 + $0x1c0] sm:$0xff]
  %v139 = vld [vmem:[%s0 + $0x1c8] sm:$0xff]
  %v140 = vld [vmem:[%s0 + $0x1d0] sm:$0xff]
  %v141 = vld [vmem:[%s0 + $0x1d8] sm:$0xff]
  %v142 = vld [vmem:[%s0 + $0x1e0] sm:$0xff]
  %v143 = vld [vmem:[%s0 + $0x1e8] sm:$0xff]
  %v144 = vld [vmem:[%s0 + $0x1f0] sm:$0xff]
  %v145 = vld [vmem:[%s0 + $0x1f8] sm:$0xff]
  %v146 = vld [vmem:[%s1] sm:$0xff]
  %v147 = vld [vmem:[%s1 + $0x8] sm:$0xff]
  %v148 = vld [vmem:[%s1 + $0x10] sm:$0xff]
  %v149 = vld [vmem:[%s1 + $0x18] sm:$0xff]
  %v150 = vld [vmem:[%s1 + $0x20] sm:$0xff]
  %v151 = vld [vmem:[%s1 + $0x28] sm:$0xff]
  %v152 = vld [vmem:[%s1 + $0x30] sm:$0xff]
  %v153 = vld [vmem:[%s1 + $0x38] sm:$0xff]
  %v154 = vld [vmem:[%s1 + $0x40] sm:$0xff]
  %v155 = vld [vmem:[%s1 + $0x48] sm:$0xff]
  %v156 = vld [vmem:[%s1 + $0x50] sm:$0xff]
  %v157 = vld [vmem:[%s1 + $0x58] sm:$0xff]
  %v158 = vld [vmem:[%s1 + $0x60] sm:$0xff]
  %v159 = vld [vmem:[%s1 + $0x68] sm:$0xff]
  %v160 = vld [vmem:[%s1 + $0x70] sm:$0xff]
  %v161 = vld [vmem:[%s1 + $0x78] sm:$0xff]
  %v162 = vld [vmem:[%s1 + $0x80] sm:$0xff]
  %v163 = vld [vmem:[%s1 + $0x88] sm:$0xff]
  %v164 = vld [vmem:[%s1 + $0x90] sm:$0xff]
  %v165 = vld [vmem:[%s1 + $0x98] sm:$0xff]
  %v166 = vld [vmem:[%s1 + $0xa0] sm:$0xff]
  %v167 = vld [vmem:[%s1 + $0xa8] sm:$0xff]
  %v168 = vld [vmem:[%s1 + $0xb0] sm:$0xff]
  %v169 = vld [vmem:[%s1 + $0xb8] sm:$0xff]
  %v170 = vld [vmem:[%s1 + $0xc0] sm:$0xff]
  %v171 = vld [vmem:[%s1 + $0xc8] sm:$0xff]
  %v172 = vld [vmem:[%s1 + $0xd0] sm:$0xff]
  %v173 = vld [vmem:[%s1 + $0xd8] sm:$0xff]
  %v174 = vld [vmem:[%s1 + $0xe0] sm:$0xff]
  %v175 = vld [vmem:[%s1 + $0xe8] sm:$0xff]
  %v176 = vld [vmem:[%s1 + $0xf0] sm:$0xff]
  %v177 = vld [vmem:[%s1 + $0xf8] sm:$0xff]
  %178 = vmatprep.subr.mxu0 0.0
  %179 = vmatpush1.msra.mxu0 %v146
  %180 = vmatprep.subr.mxu0 0.0
  %181 = vmatpush1.msra.mxu0 %v147
  %182 = vmatprep.subr.mxu0 0.0
  %183 = vmatpush1.msra.mxu0 %v148
  %184 = vmatprep.subr.mxu0 0.0
  %185 = vmatpush1.msra.mxu0 %v149
  %186 = vmatprep.subr.mxu0 0.0
  %187 = vmatpush1.msra.mxu0 %v150
  %188 = vmatprep.subr.mxu0 0.0
  %189 = vmatpush1.msra.mxu0 %v151
  %190 = vmatprep.subr.mxu0 0.0
  %191 = vmatpush1.msra.mxu0 %v152
  %192 = vmatprep.subr.mxu0 0.0
  %193 = vmatpush1.msra.mxu0 %v153
  %194 = vmatprep.subr.mxu0 0.0
  %195 = vmatpush1.msra.mxu0 %v154
  %196 = vmatprep.subr.mxu0 0.0
  %197 = vmatpush1.msra.mxu0 %v155
  %198 = vmatprep.subr.mxu0 0.0
  %199 = vmatpush1.msra.mxu0 %v156
  %200 = vmatprep.subr.mxu0 0.0
  %201 = vmatpush1.msra.mxu0 %v157
  %202 = vmatprep.subr.mxu0 0.0
  %203 = vmatpush1.msra.mxu0 %v158
  %204 = vmatprep.subr.mxu0 0.0
  %205 = vmatpush1.msra.mxu0 %v159
  %206 = vmatprep.subr.mxu0 0.0
  %207 = vmatpush1.msra.mxu0 %v160
  %208 = vmatprep.subr.mxu0 0.0
  %209 = vmatpush1.msra.mxu0 %v161
  %210 = vmatprep.subr.mxu0 0.0
  %211 = vmatpush1.msra.mxu0 %v162
  %212 = vmatprep.subr.mxu0 0.0
  %213 = vmatpush1.msra.mxu0 %v163
  %214 = vmatprep.subr.mxu0 0.0
  %215 = vmatpush1.msra.mxu0 %v164
  %216 = vmatprep.subr.mxu0 0.0
  %217 = vmatpush1.msra.mxu0 %v165
  %218 = vmatprep.subr.mxu0 0.0
  %219 = vmatpush1.msra.mxu0 %v166
  %220 = vmatprep.subr.mxu0 0.0
  %221 = vmatpush1.msra.mxu0 %v167
  %222 = vmatprep.subr.mxu0 0.0
  %223 = vmatpush1.msra.mxu0 %v168
  %224 = vmatprep.subr.mxu0 0.0
  %225 = vmatpush1.msra.mxu0 %v169
  %226 = vmatprep.subr.mxu0 0.0
  %227 = vmatpush1.msra.mxu0 %v170
  %228 = vmatprep.subr.mxu0 0.0
  %229 = vmatpush1.msra.mxu0 %v171
  %230 = vmatprep.subr.mxu0 0.0
  %231 = vmatpush1.msra.mxu0 %v172
  %232 = vmatprep.subr.mxu0 0.0
  %233 = vmatpush1.msra.mxu0 %v173
  %234 = vmatprep.subr.mxu0 0.0
  %235 = vmatpush1.msra.mxu0 %v174
  %236 = vmatprep.subr.mxu0 0.0
  %237 = vmatpush1.msra.mxu0 %v175
  %238 = vmatprep.subr.mxu0 0.0
  %239 = vmatpush1.msra.mxu0 %v176
  %240 = vmatprep.subr.mxu0 0.0
  %241 = vmatpush1.msra.mxu0 %v177
  %242 = vmatprep.mubr.f32.mxu0 %v83
  %243 = vmatmul.mubr.f32.gmra.mrb[0].mxu0 %v82
  %v244 = vpop.f32.mrb[0].mxu0
  %v245 = vadd.f32 0.0, %v244
  %v246 = vpop.f32.mrb[0].mxu0
  %247 = vmatprep.mubr.f32.mxu0 %v85
  %248 = vmatmul.mubr.f32.gmra.mrb[0].mxu0 %v84
  %v249 = vpop.f32.mrb[0].mxu0
  %v250 = vadd.f32 0.0, %v249
  %v251 = vpop.f32.mrb[0].mxu0
  %252 = vmatprep.mubr.f32.mxu0 %v87
  %253 = vmatmul.mubr.f32.gmra.mrb[0].mxu0 %v86
  %v254 = vpop.f32.mrb[0].mxu0
  %v255 = vadd.f32 0.0, %v254
  %v256 = vpop.f32.mrb[0].mxu0
  %257 = vmatprep.mubr.f32.mxu0 %v89
  %258 = vmatmul.mubr.f32.gmra.mrb[0].mxu0 %v88
  %v259 = vpop.f32.mrb[0].mxu0
  %v260 = vadd.f32 0.0, %v259
  %v261 = vpop.f32.mrb[0].mxu0
  %262 = vmatprep.mubr.f32.mxu0 %v91
  %263 = vmatmul.mubr.f32.gmra.mrb[0].mxu0 %v90
  %v264 = vpop.f32.mrb[0].mxu0
  %v265 = vadd.f32 0.0, %v264
  %v266 = vpop.f32.mrb[0].mxu0
  %267 = vmatprep.mubr.f32.mxu0 %v93
  %268 = vmatmul.mubr.f32.gmra.mrb[0].mxu0 %v92
  %v269 = vpop.f32.mrb[0].mxu0
  %v270 = vadd.f32 0.0, %v269
  %v271 = vpop.f32.mrb[0].mxu0
  %272 = vmatprep.mubr.f32.mxu0 %v95
  %273 = vmatmul.mubr.f32.gmra.mrb[0].mxu0 %v94
  %v274 = vpop.f32.mrb[0].mxu0
  %v275 = vadd.f32 0.0, %v274
  %v276 = vpop.f32.mrb[0].mxu0
  %277 = vmatprep.mubr.f32.mxu0 %v97
  %278 = vmatmul.mubr.f32.gmra.mrb[0].mxu0 %v96
  %v279 = vpop.f32.mrb[0].mxu0
  %v280 = vadd.f32 0.0, %v279
  %v281 = vpop.f32.mrb[0].mxu0
  %282 = vmatprep.mubr.f32.mxu0 %v99
  %283 = vmatmul.mubr.f32.gmra.mrb[0].mxu0 %v98
  %v284 = vpop.f32.mrb[0].mxu0
  %v285 = vadd.f32 0.0, %v284
  %v286 = vpop.f32.mrb[0].mxu0
  %287 = vmatprep.mubr.f32.mxu0 %v101
  %288 = vmatmul.mubr.f32.gmra.mrb[0].mxu0 %v100
  %v289 = vpop.f32.mrb[0].mxu0
  %v290 = vadd.f32 0.0, %v289
  %v291 = vpop.f32.mrb[0].mxu0
  %292 = vmatprep.mubr.f32.mxu0 %v103
  %293 = vmatmul.mubr.f32.gmra.mrb[0].mxu0 %v102
  %v294 = vpop.f32.mrb[0].mxu0
  %v295 = vadd.f32 0.0, %v294
  %v296 = vpop.f32.mrb[0].mxu0
  %297 = vmatprep.mubr.f32.mxu0 %v105
  %298 = vmatmul.mubr.f32.gmra.mrb[0].mxu0 %v104
  %v299 = vpop.f32.mrb[0].mxu0
  %v300 = vadd.f32 0.0, %v299
  %v301 = vpop.f32.mrb[0].mxu0
  %302 = vmatprep.mubr.f32.mxu0 %v107
  %303 = vmatmul.mubr.f32.gmra.mrb[0].mxu0 %v106
  %v304 = vpop.f32.mrb[0].mxu0
  %v305 = vadd.f32 0.0, %v304
  %v306 = vpop.f32.mrb[0].mxu0
  %307 = vmatprep.mubr.f32.mxu0 %v109
  %308 = vmatmul.mubr.f32.gmra.mrb[0].mxu0 %v108
  %v309 = vpop.f32.mrb[0].mxu0
  %v310 = vadd.f32 0.0, %v309
  %v311 = vpop.f32.mrb[0].mxu0
  %312 = vmatprep.mubr.f32.mxu0 %v111
  %313 = vmatmul.mubr.f32.gmra.mrb[0].mxu0 %v110
  %v314 = vpop.f32.mrb[0].mxu0
  %v315 = vadd.f32 0.0, %v314
  %v316 = vpop.f32.mrb[0].mxu0
  %317 = vmatprep.mubr.f32.mxu0 %v113
  %318 = vmatmul.mubr.f32.gmra.mrb[0].mxu0 %v112
  %v319 = vpop.f32.mrb[0].mxu0
  %v320 = vadd.f32 0.0, %v319
  %v321 = vpop.f32.mrb[0].mxu0
  %322 = vmatprep.mubr.f32.mxu0 %v115
  %323 = vmatmul.mubr.f32.gmra.mrb[0].mxu0 %v114
  %v324 = vpop.f32.mrb[0].mxu0
  %v325 = vadd.f32 0.0, %v324
  %v326 = vpop.f32.mrb[0].mxu0
  %327 = vmatprep.mubr.f32.mxu0 %v117
  %328 = vmatmul.mubr.f32.gmra.mrb[0].mxu0 %v116
  %v329 = vpop.f32.mrb[0].mxu0
  %v330 = vadd.f32 0.0, %v329
  %v331 = vpop.f32.mrb[0].mxu0
  %332 = vmatprep.mubr.f32.mxu0 %v119
  %333 = vmatmul.mubr.f32.gmra.mrb[0].mxu0 %v118
  %v334 = vpop.f32.mrb[0].mxu0
  %v335 = vadd.f32 0.0, %v334
  %v336 = vpop.f32.mrb[0].mxu0
  %337 = vmatprep.mubr.f32.mxu0 %v121
  %338 = vmatmul.mubr.f32.gmra.mrb[0].mxu0 %v120
  %v339 = vpop.f32.mrb[0].mxu0
  %v340 = vadd.f32 0.0, %v339
  %v341 = vpop.f32.mrb[0].mxu0
  %342 = vmatprep.mubr.f32.mxu0 %v123
  %343 = vmatmul.mubr.f32.gmra.mrb[0].mxu0 %v122
  %v344 = vpop.f32.mrb[0].mxu0
  %v345 = vadd.f32 0.0, %v344
  %v346 = vpop.f32.mrb[0].mxu0
  %347 = vmatprep.mubr.f32.mxu0 %v125
  %348 = vmatmul.mubr.f32.gmra.mrb[0].mxu0 %v124
  %v349 = vpop.f32.mrb[0].mxu0
  %v350 = vadd.f32 0.0, %v349
  %v351 = vpop.f32.mrb[0].mxu0
  %352 = vmatprep.mubr.f32.mxu0 %v127
  %353 = vmatmul.mubr.f32.gmra.mrb[0].mxu0 %v126
  %v354 = vpop.f32.mrb[0].mxu0
  %v355 = vadd.f32 0.0, %v354
  %v356 = vpop.f32.mrb[0].mxu0
  %357 = vmatprep.mubr.f32.mxu0 %v129
  %358 = vmatmul.mubr.f32.gmra.mrb[0].mxu0 %v128
  %v359 = vpop.f32.mrb[0].mxu0
  %v360 = vadd.f32 0.0, %v359
  %v361 = vpop.f32.mrb[0].mxu0
  %362 = vmatprep.mubr.f32.mxu0 %v131
  %363 = vmatmul.mubr.f32.gmra.mrb[0].mxu0 %v130
  %v364 = vpop.f32.mrb[0].mxu0
  %v365 = vadd.f32 0.0, %v364
  %v366 = vpop.f32.mrb[0].mxu0
  %367 = vmatprep.mubr.f32.mxu0 %v133
  %368 = vmatmul.mubr.f32.gmra.mrb[0].mxu0 %v132
  %v369 = vpop.f32.mrb[0].mxu0
  %v370 = vadd.f32 0.0, %v369
  %v371 = vpop.f32.mrb[0].mxu0
  %372 = vmatprep.mubr.f32.mxu0 %v135
  %373 = vmatmul.mubr.f32.gmra.mrb[0].mxu0 %v134
  %v374 = vpop.f32.mrb[0].mxu0
  %v375 = vadd.f32 0.0, %v374
  %v376 = vpop.f32.mrb[0].mxu0
  %377 = vmatprep.mubr.f32.mxu0 %v137
  %378 = vmatmul.mubr.f32.gmra.mrb[0].mxu0 %v136
  %v379 = vpop.f32.mrb[0].mxu0
  %v380 = vadd.f32 0.0, %v379
  %v381 = vpop.f32.mrb[0].mxu0
  %382 = vmatprep.mubr.f32.mxu0 %v139
  %383 = vmatmul.mubr.f32.gmra.mrb[0].mxu0 %v138
  %v384 = vpop.f32.mrb[0].mxu0
  %v385 = vadd.f32 0.0, %v384
  %v386 = vpop.f32.mrb[0].mxu0
  %387 = vmatprep.mubr.f32.mxu0 %v141
  %388 = vmatmul.mubr.f32.gmra.mrb[0].mxu0 %v140
  %v389 = vpop.f32.mrb[0].mxu0
  %v390 = vadd.f32 0.0, %v389
  %v391 = vpop.f32.mrb[0].mxu0
  %392 = vmatprep.mubr.f32.mxu0 %v143
  %393 = vmatmul.mubr.f32.gmra.mrb[0].mxu0 %v142
  %v394 = vpop.f32.mrb[0].mxu0
  %v395 = vadd.f32 0.0, %v394
  %v396 = vpop.f32.mrb[0].mxu0
  %397 = vmatprep.mubr.f32.mxu0 %v145
  %398 = vmatmul.mubr.f32.gmra.mrb[0].mxu0 %v144
  %v399 = vpop.f32.mrb[0].mxu0
  %v400 = vadd.f32 0.0, %v399
  %v401 = vpop.f32.mrb[0].mxu0
  %402 = vdwg.mxu0
  %v403 = vadd.f32 %v50, %v245
  %v404 = vadd.f32 %v51, %v250
  %v405 = vadd.f32 %v52, %v255
  %v406 = vadd.f32 %v53, %v260
  %v407 = vadd.f32 %v54, %v265
  %v408 = vadd.f32 %v55, %v270
  %v409 = vadd.f32 %v56, %v275
  %v410 = vadd.f32 %v57, %v280
  %v411 = vadd.f32 %v58, %v285
  %v412 = vadd.f32 %v59, %v290
  %v413 = vadd.f32 %v60, %v295
  %v414 = vadd.f32 %v61, %v300
  %v415 = vadd.f32 %v62, %v305
  %v416 = vadd.f32 %v63, %v310
  %v417 = vadd.f32 %v64, %v315
  %v418 = vadd.f32 %v65, %v320
  %v419 = vadd.f32 %v66, %v325
  %v420 = vadd.f32 %v67, %v330
  %v421 = vadd.f32 %v68, %v335
  %v422 = vadd.f32 %v69, %v340
  %v423 = vadd.f32 %v70, %v345
  %v424 = vadd.f32 %v71, %v350
  %v425 = vadd.f32 %v72, %v355
  %v426 = vadd.f32 %v73, %v360
  %v427 = vadd.f32 %v74, %v365
  %v428 = vadd.f32 %v75, %v370
  %v429 = vadd.f32 %v76, %v375
  %v430 = vadd.f32 %v77, %v380
  %v431 = vadd.f32 %v78, %v385
  %v432 = vadd.f32 %v79, %v390
  %v433 = vadd.f32 %v80, %v395
  %v434 = vadd.f32 %v81, %v400
  %435 = vst [vmem:[#allocation2] sm:$0xff] %v403
  %436 = vst [vmem:[#allocation2 + $0x8] sm:$0xff] %v404
  %437 = vst [vmem:[#allocation2 + $0x10] sm:$0xff] %v405
  %438 = vst [vmem:[#allocation2 + $0x18] sm:$0xff] %v406
  %439 = vst [vmem:[#allocation2 + $0x20] sm:$0xff] %v407
  %440 = vst [vmem:[#allocation2 + $0x28] sm:$0xff] %v408
  %441 = vst [vmem:[#allocation2 + $0x30] sm:$0xff] %v409
  %442 = vst [vmem:[#allocation2 + $0x38] sm:$0xff] %v410
  %443 = vst [vmem:[#allocation2 + $0x40] sm:$0xff] %v411
  %444 = vst [vmem:[#allocation2 + $0x48] sm:$0xff] %v412
  %445 = vst [vmem:[#allocation2 + $0x50] sm:$0xff] %v413
  %446 = vst [vmem:[#allocation2 + $0x58] sm:$0xff] %v414
  %447 = vst [vmem:[#allocation2 + $0x60] sm:$0xff] %v415
  %448 = vst [vmem:[#allocation2 + $0x68] sm:$0xff] %v416
  %449 = vst [vmem:[#allocation2 + $0x70] sm:$0xff] %v417
  %450 = vst [vmem:[#allocation2 + $0x78] sm:$0xff] %v418
  %451 = vst [vmem:[#allocation2 + $0x80] sm:$0xff] %v419
  %452 = vst [vmem:[#allocation2 + $0x88] sm:$0xff] %v420
  %453 = vst [vmem:[#allocation2 + $0x90] sm:$0xff] %v421
  %454 = vst [vmem:[#allocation2 + $0x98] sm:$0xff] %v422
  %455 = vst [vmem:[#allocation2 + $0xa0] sm:$0xff] %v423
  %456 = vst [vmem:[#allocation2 + $0xa8] sm:$0xff] %v424
  %457 = vst [vmem:[#allocation2 + $0xb0] sm:$0xff] %v425
  %458 = vst [vmem:[#allocation2 + $0xb8] sm:$0xff] %v426
  %459 = vst [vmem:[#allocation2 + $0xc0] sm:$0xff] %v427
  %460 = vst [vmem:[#allocation2 + $0xc8] sm:$0xff] %v428
  %461 = vst [vmem:[#allocation2 + $0xd0] sm:$0xff] %v429
  %462 = vst [vmem:[#allocation2 + $0xd8] sm:$0xff] %v430
  %463 = vst [vmem:[#allocation2 + $0xe0] sm:$0xff] %v431
  %464 = vst [vmem:[#allocation2 + $0xe8] sm:$0xff] %v432
  %465 = vst [vmem:[#allocation2 + $0xf0] sm:$0xff] %v433
  %466 = vst [vmem:[#allocation2 + $0xf8] sm:$0xff] %v434
  // Predicated region
  $region18: #{gcn_forward.7} parent=0 // pred_check
    %p467 = pneg %p14
  $region19: #{gcn_forward.7} parent=0 // pred_check_branch
    %469 = sbr.rel (%p467) target = $region21
  $region20: #{gcn_forward.7} parent=0 // pred_region
    %v470 = vld [vmem:[#allocation2] sm:$0xff]
    %v471 = vld [vmem:[#allocation2 + $0x8] sm:$0xff]
    %v472 = vld [vmem:[#allocation2 + $0x10] sm:$0xff]
    %v473 = vld [vmem:[#allocation2 + $0x18] sm:$0xff]
    %v474 = vld [vmem:[#allocation2 + $0x20] sm:$0xff]
    %v475 = vld [vmem:[#allocation2 + $0x28] sm:$0xff]
    %v476 = vld [vmem:[#allocation2 + $0x30] sm:$0xff]
    %v477 = vld [vmem:[#allocation2 + $0x38] sm:$0xff]
    %v478 = vld [vmem:[#allocation2 + $0x40] sm:$0xff]
    %v479 = vld [vmem:[#allocation2 + $0x48] sm:$0xff]
    %v480 = vld [vmem:[#allocation2 + $0x50] sm:$0xff]
    %v481 = vld [vmem:[#allocation2 + $0x58] sm:$0xff]
    %v482 = vld [vmem:[#allocation2 + $0x60] sm:$0xff]
    %v483 = vld [vmem:[#allocation2 + $0x68] sm:$0xff]
    %v484 = vld [vmem:[#allocation2 + $0x70] sm:$0xff]
    %v485 = vld [vmem:[#allocation2 + $0x78] sm:$0xff]
    %v486 = vld [vmem:[#allocation2 + $0x80] sm:$0xff]
    %v487 = vld [vmem:[#allocation2 + $0x88] sm:$0xff]
    %v488 = vld [vmem:[#allocation2 + $0x90] sm:$0xff]
    %v489 = vld [vmem:[#allocation2 + $0x98] sm:$0xff]
    %v490 = vld [vmem:[#allocation2 + $0xa0] sm:$0xff]
    %v491 = vld [vmem:[#allocation2 + $0xa8] sm:$0xff]
    %v492 = vld [vmem:[#allocation2 + $0xb0] sm:$0xff]
    %v493 = vld [vmem:[#allocation2 + $0xb8] sm:$0xff]
    %v494 = vld [vmem:[#allocation2 + $0xc0] sm:$0xff]
    %v495 = vld [vmem:[#allocation2 + $0xc8] sm:$0xff]
    %v496 = vld [vmem:[#allocation2 + $0xd0] sm:$0xff]
    %v497 = vld [vmem:[#allocation2 + $0xd8] sm:$0xff]
    %v498 = vld [vmem:[#allocation2 + $0xe0] sm:$0xff]
    %v499 = vld [vmem:[#allocation2 + $0xe8] sm:$0xff]
    %v500 = vld [vmem:[#allocation2 + $0xf0] sm:$0xff]
    %v501 = vld [vmem:[#allocation2 + $0xf8] sm:$0xff]
    %v502 = vld [vmem:[%s2] sm:$0x1]
    %v504 = vlaneseq
    %v505 = vshrl.u32 %v504, 7
    %v506 = vsub.s32 0, %v505
    %v507 = vrot.slane %v502, %v506
    %v509 = vadd.f32 %v470, %v507
    %v510 = vadd.f32 %v471, %v507
    %v511 = vadd.f32 %v472, %v507
    %v512 = vadd.f32 %v473, %v507
    %v513 = vadd.f32 %v474, %v507
    %v514 = vadd.f32 %v475, %v507
    %v515 = vadd.f32 %v476, %v507
    %v516 = vadd.f32 %v477, %v507
    %v517 = vadd.f32 %v478, %v507
    %v518 = vadd.f32 %v479, %v507
    %v519 = vadd.f32 %v480, %v507
    %v520 = vadd.f32 %v481, %v507
    %v521 = vadd.f32 %v482, %v507
    %v522 = vadd.f32 %v483, %v507
    %v523 = vadd.f32 %v484, %v507
    %v524 = vadd.f32 %v485, %v507
    %v525 = vadd.f32 %v486, %v507
    %v526 = vadd.f32 %v487, %v507
    %v527 = vadd.f32 %v488, %v507
    %v528 = vadd.f32 %v489, %v507
    %v529 = vadd.f32 %v490, %v507
    %v530 = vadd.f32 %v491, %v507
    %v531 = vadd.f32 %v492, %v507
    %v532 = vadd.f32 %v493, %v507
    %v533 = vadd.f32 %v494, %v507
    %v534 = vadd.f32 %v495, %v507
    %v535 = vadd.f32 %v496, %v507
    %v536 = vadd.f32 %v497, %v507
    %v537 = vadd.f32 %v498, %v507
    %v538 = vadd.f32 %v499, %v507
    %v539 = vadd.f32 %v500, %v507
    %v540 = vadd.f32 %v501, %v507
    %541 = vst [vmem:[%s3] sm:$0xff] %v509
    %542 = vst [vmem:[%s3 + $0x8] sm:$0xff] %v510
    %543 = vst [vmem:[%s3 + $0x10] sm:$0xff] %v511
    %544 = vst [vmem:[%s3 + $0x18] sm:$0xff] %v512
    %545 = vst [vmem:[%s3 + $0x20] sm:$0xff] %v513
    %546 = vst [vmem:[%s3 + $0x28] sm:$0xff] %v514
    %547 = vst [vmem:[%s3 + $0x30] sm:$0xff] %v515
    %548 = vst [vmem:[%s3 + $0x38] sm:$0xff] %v516
    %549 = vst [vmem:[%s3 + $0x40] sm:$0xff] %v517
    %550 = vst [vmem:[%s3 + $0x48] sm:$0xff] %v518
    %551 = vst [vmem:[%s3 + $0x50] sm:$0xff] %v519
    %552 = vst [vmem:[%s3 + $0x58] sm:$0xff] %v520
    %553 = vst [vmem:[%s3 + $0x60] sm:$0xff] %v521
    %554 = vst [vmem:[%s3 + $0x68] sm:$0xff] %v522
    %555 = vst [vmem:[%s3 + $0x70] sm:$0xff] %v523
    %556 = vst [vmem:[%s3 + $0x78] sm:$0xff] %v524
    %557 = vst [vmem:[%s3 + $0x80] sm:$0xff] %v525
    %558 = vst [vmem:[%s3 + $0x88] sm:$0xff] %v526
    %559 = vst [vmem:[%s3 + $0x90] sm:$0xff] %v527
    %560 = vst [vmem:[%s3 + $0x98] sm:$0xff] %v528
    %561 = vst [vmem:[%s3 + $0xa0] sm:$0xff] %v529
    %562 = vst [vmem:[%s3 + $0xa8] sm:$0xff] %v530
    %563 = vst [vmem:[%s3 + $0xb0] sm:$0xff] %v531
    %564 = vst [vmem:[%s3 + $0xb8] sm:$0xff] %v532
    %565 = vst [vmem:[%s3 + $0xc0] sm:$0xff] %v533
    %566 = vst [vmem:[%s3 + $0xc8] sm:$0xff] %v534
    %567 = vst [vmem:[%s3 + $0xd0] sm:$0xff] %v535
    %568 = vst [vmem:[%s3 + $0xd8] sm:$0xff] %v536
    %569 = vst [vmem:[%s3 + $0xe0] sm:$0xff] %v537
    %570 = vst [vmem:[%s3 + $0xe8] sm:$0xff] %v538
    %571 = vst [vmem:[%s3 + $0xf0] sm:$0xff] %v539
    %572 = vst [vmem:[%s3 + $0xf8] sm:$0xff] %v540
  $region21: #{gcn_forward.7} parent=0 // pred_fallthru
    _
  // Predicated region
  $region22: #{gcn_forward.7} parent=0 // pred_check
    _
  $region23: #{gcn_forward.7} parent=0 // pred_check_branch
    %574 = sbr.rel (0) target = $region25
  $region24: #{gcn_forward.7} parent=0 // pred_region
    _
  $region25: #{gcn_forward.7} parent=0 // pred_fallthru
    _
  // Predicated region
  $region26: #{gcn_forward.7} parent=0 // pred_check
    _
  $region27: #{gcn_forward.7} parent=0 // pred_check_branch
    %576 = sbr.rel (0) target = $region29
  $region28: #{gcn_forward.7} parent=0 // pred_region
    _
  $region29: #{gcn_forward.7} parent=0 // pred_fallthru
    _

// kernel: gcn_forward.5
$region0: #{gcn_forward.5}
  #allocation0 [shape = 'u32[]', space=smem, size = 0x4, offset = 0x4, fixed_abs, tag = 'smem constant byte address 0x4 - core index']
  #allocation1 [shape = 'u32[144,128]{1,0:T(1,128)}', space=vmem, size = 0x12000, scoped, tag = 'internal scratch']
  #allocation2 [shape = 'f32[256,128]{1,0:T(8,128)}', space=vmem, size = 0x20000, scoped, tag = 'scratch operand']
  %s0 = inlined_call_operand.vmem [shape: f32[256,256], index: 0, kind: input, shape index: {}]
  %s1 = inlined_call_operand.vmem [shape: f32[256,128], index: 1, kind: input, shape index: {}]
  %s2 = inlined_call_operand.vmem [shape: f32[1,128], index: 2, kind: input, shape index: {}]
  %s3 = inlined_call_operand.vmem [shape: f32[256,128], index: 3, kind: output, shape index: {}]
  %s4 = sld [smem:[#allocation0]]
  $region30: #{gcn_forward.5} parent=0
    _
  %s6 = ssub.s32 1, %s4
  %s7 = scalar_select 0, %s6, %s4
  // Predicated region
  $region2: #{gcn_forward.5} parent=0 // pred_check
    _
  $region3: #{gcn_forward.5} parent=0 // pred_check_branch
    %9 = sbr.rel (0) target = $region5
  $region4: #{gcn_forward.5} parent=0 // pred_region
    _
  $region5: #{gcn_forward.5} parent=0 // pred_fallthru
    _
  // Predicated region
  $region6: #{gcn_forward.5} parent=0 // pred_check
    _
  $region7: #{gcn_forward.5} parent=0 // pred_check_branch
    %11 = sbr.rel (0) target = $region9
  $region8: #{gcn_forward.5} parent=0 // pred_region
    _
  $region9: #{gcn_forward.5} parent=0 // pred_fallthru
    _
  // Predicated region
  $region10: #{gcn_forward.5} parent=0 // pred_check
    _
  $region11: #{gcn_forward.5} parent=0 // pred_check_branch
    %13 = sbr.rel (0) target = $region13
  $region12: #{gcn_forward.5} parent=0 // pred_region
    _
  $region13: #{gcn_forward.5} parent=0 // pred_fallthru
    _
  %p14 = scmp.eq.s32.totalorder 0, 0
  // Predicated region
  $region14: #{gcn_forward.5} parent=0 // pred_check
    %p15 = pneg %p14
  $region15: #{gcn_forward.5} parent=0 // pred_check_branch
    %17 = sbr.rel (%p15) target = $region17
  $region16: #{gcn_forward.5} parent=0 // pred_region
    %18 = vst [vmem:[#allocation2] sm:$0xff] 0.0
    %19 = vst [vmem:[#allocation2 + $0x8] sm:$0xff] 0.0
    %20 = vst [vmem:[#allocation2 + $0x10] sm:$0xff] 0.0
    %21 = vst [vmem:[#allocation2 + $0x18] sm:$0xff] 0.0
    %22 = vst [vmem:[#allocation2 + $0x20] sm:$0xff] 0.0
    %23 = vst [vmem:[#allocation2 + $0x28] sm:$0xff] 0.0
    %24 = vst [vmem:[#allocation2 + $0x30] sm:$0xff] 0.0
    %25 = vst [vmem:[#allocation2 + $0x38] sm:$0xff] 0.0
    %26 = vst [vmem:[#allocation2 + $0x40] sm:$0xff] 0.0
    %27 = vst [vmem:[#allocation2 + $0x48] sm:$0xff] 0.0
    %28 = vst [vmem:[#allocation2 + $0x50] sm:$0xff] 0.0
    %29 = vst [vmem:[#allocation2 + $0x58] sm:$0xff] 0.0
    %30 = vst [vmem:[#allocation2 + $0x60] sm:$0xff] 0.0
    %31 = vst [vmem:[#allocation2 + $0x68] sm:$0xff] 0.0
    %32 = vst [vmem:[#allocation2 + $0x70] sm:$0xff] 0.0
    %33 = vst [vmem:[#allocation2 + $0x78] sm:$0xff] 0.0
    %34 = vst [vmem:[#allocation2 + $0x80] sm:$0xff] 0.0
    %35 = vst [vmem:[#allocation2 + $0x88] sm:$0xff] 0.0
    %36 = vst [vmem:[#allocation2 + $0x90] sm:$0xff] 0.0
    %37 = vst [vmem:[#allocation2 + $0x98] sm:$0xff] 0.0
    %38 = vst [vmem:[#allocation2 + $0xa0] sm:$0xff] 0.0
    %39 = vst [vmem:[#allocation2 + $0xa8] sm:$0xff] 0.0
    %40 = vst [vmem:[#allocation2 + $0xb0] sm:$0xff] 0.0
    %41 = vst [vmem:[#allocation2 + $0xb8] sm:$0xff] 0.0
    %42 = vst [vmem:[#allocation2 + $0xc0] sm:$0xff] 0.0
    %43 = vst [vmem:[#allocation2 + $0xc8] sm:$0xff] 0.0
    %44 = vst [vmem:[#allocation2 + $0xd0] sm:$0xff] 0.0
    %45 = vst [vmem:[#allocation2 + $0xd8] sm:$0xff] 0.0
    %46 = vst [vmem:[#allocation2 + $0xe0] sm:$0xff] 0.0
    %47 = vst [vmem:[#allocation2 + $0xe8] sm:$0xff] 0.0
    %48 = vst [vmem:[#allocation2 + $0xf0] sm:$0xff] 0.0
    %49 = vst [vmem:[#allocation2 + $0xf8] sm:$0xff] 0.0
  $region17: #{gcn_forward.5} parent=0 // pred_fallthru
    _
  %v50 = vld [vmem:[#allocation2] sm:$0xff]
  %v51 = vld [vmem:[#allocation2 + $0x8] sm:$0xff]
  %v52 = vld [vmem:[#allocation2 + $0x10] sm:$0xff]
  %v53 = vld [vmem:[#allocation2 + $0x18] sm:$0xff]
  %v54 = vld [vmem:[#allocation2 + $0x20] sm:$0xff]
  %v55 = vld [vmem:[#allocation2 + $0x28] sm:$0xff]
  %v56 = vld [vmem:[#allocation2 + $0x30] sm:$0xff]
  %v57 = vld [vmem:[#allocation2 + $0x38] sm:$0xff]
  %v58 = vld [vmem:[#allocation2 + $0x40] sm:$0xff]
  %v59 = vld [vmem:[#allocation2 + $0x48] sm:$0xff]
  %v60 = vld [vmem:[#allocation2 + $0x50] sm:$0xff]
  %v61 = vld [vmem:[#allocation2 + $0x58] sm:$0xff]
  %v62 = vld [vmem:[#allocation2 + $0x60] sm:$0xff]
  %v63 = vld [vmem:[#allocation2 + $0x68] sm:$0xff]
  %v64 = vld [vmem:[#allocation2 + $0x70] sm:$0xff]
  %v65 = vld [vmem:[#allocation2 + $0x78] sm:$0xff]
  %v66 = vld [vmem:[#allocation2 + $0x80] sm:$0xff]
  %v67 = vld [vmem:[#allocation2 + $0x88] sm:$0xff]
  %v68 = vld [vmem:[#allocation2 + $0x90] sm:$0xff]
  %v69 = vld [vmem:[#allocation2 + $0x98] sm:$0xff]
  %v70 = vld [vmem:[#allocation2 + $0xa0] sm:$0xff]
  %v71 = vld [vmem:[#allocation2 + $0xa8] sm:$0xff]
  %v72 = vld [vmem:[#allocation2 + $0xb0] sm:$0xff]
  %v73 = vld [vmem:[#allocation2 + $0xb8] sm:$0xff]
  %v74 = vld [vmem:[#allocation2 + $0xc0] sm:$0xff]
  %v75 = vld [vmem:[#allocation2 + $0xc8] sm:$0xff]
  %v76 = vld [vmem:[#allocation2 + $0xd0] sm:$0xff]
  %v77 = vld [vmem:[#allocation2 + $0xd8] sm:$0xff]
  %v78 = vld [vmem:[#allocation2 + $0xe0] sm:$0xff]
  %v79 = vld [vmem:[#allocation2 + $0xe8] sm:$0xff]
  %v80 = vld [vmem:[#allocation2 + $0xf0] sm:$0xff]
  %v81 = vld [vmem:[#allocation2 + $0xf8] sm:$0xff]
  %v82 = vld [vmem:[%s0] sm:$0xff]
  %v83 = vld [vmem:[%s0 + $0x8] sm:$0xff]
  %v84 = vld [vmem:[%s0 + $0x10] sm:$0xff]
  %v85 = vld [vmem:[%s0 + $0x18] sm:$0xff]
  %v86 = vld [vmem:[%s0 + $0x20] sm:$0xff]
  %v87 = vld [vmem:[%s0 + $0x28] sm:$0xff]
  %v88 = vld [vmem:[%s0 + $0x30] sm:$0xff]
  %v89 = vld [vmem:[%s0 + $0x38] sm:$0xff]
  %v90 = vld [vmem:[%s0 + $0x40] sm:$0xff]
  %v91 = vld [vmem:[%s0 + $0x48] sm:$0xff]
  %v92 = vld [vmem:[%s0 + $0x50] sm:$0xff]
  %v93 = vld [vmem:[%s0 + $0x58] sm:$0xff]
  %v94 = vld [vmem:[%s0 + $0x60] sm:$0xff]
  %v95 = vld [vmem:[%s0 + $0x68] sm:$0xff]
  %v96 = vld [vmem:[%s0 + $0x70] sm:$0xff]
  %v97 = vld [vmem:[%s0 + $0x78] sm:$0xff]
  %v98 = vld [vmem:[%s0 + $0x80] sm:$0xff]
  %v99 = vld [vmem:[%s0 + $0x88] sm:$0xff]
  %v100 = vld [vmem:[%s0 + $0x90] sm:$0xff]
  %v101 = vld [vmem:[%s0 + $0x98] sm:$0xff]
  %v102 = vld [vmem:[%s0 + $0xa0] sm:$0xff]
  %v103 = vld [vmem:[%s0 + $0xa8] sm:$0xff]
  %v104 = vld [vmem:[%s0 + $0xb0] sm:$0xff]
  %v105 = vld [vmem:[%s0 + $0xb8] sm:$0xff]
  %v106 = vld [vmem:[%s0 + $0xc0] sm:$0xff]
  %v107 = vld [vmem:[%s0 + $0xc8] sm:$0xff]
  %v108 = vld [vmem:[%s0 + $0xd0] sm:$0xff]
  %v109 = vld [vmem:[%s0 + $0xd8] sm:$0xff]
  %v110 = vld [vmem:[%s0 + $0xe0] sm:$0xff]
  %v111 = vld [vmem:[%s0 + $0xe8] sm:$0xff]
  %v112 = vld [vmem:[%s0 + $0xf0] sm:$0xff]
  %v113 = vld [vmem:[%s0 + $0xf8] sm:$0xff]
  %v114 = vld [vmem:[%s0 + $0x100] sm:$0xff]
  %v115 = vld [vmem:[%s0 + $0x108] sm:$0xff]
  %v116 = vld [vmem:[%s0 + $0x110] sm:$0xff]
  %v117 = vld [vmem:[%s0 + $0x118] sm:$0xff]
  %v118 = vld [vmem:[%s0 + $0x120] sm:$0xff]
  %v119 = vld [vmem:[%s0 + $0x128] sm:$0xff]
  %v120 = vld [vmem:[%s0 + $0x130] sm:$0xff]
  %v121 = vld [vmem:[%s0 + $0x138] sm:$0xff]
  %v122 = vld [vmem:[%s0 + $0x140] sm:$0xff]
  %v123 = vld [vmem:[%s0 + $0x148] sm:$0xff]
  %v124 = vld [vmem:[%s0 + $0x150] sm:$0xff]
  %v125 = vld [vmem:[%s0 + $0x158] sm:$0xff]
  %v126 = vld [vmem:[%s0 + $0x160] sm:$0xff]
  %v127 = vld [vmem:[%s0 + $0x168] sm:$0xff]
  %v128 = vld [vmem:[%s0 + $0x170] sm:$0xff]
  %v129 = vld [vmem:[%s0 + $0x178] sm:$0xff]
  %v130 = vld [vmem:[%s0 + $0x180] sm:$0xff]
  %v131 = vld [vmem:[%s0 + $0x188] sm:$0xff]
  %v132 = vld [vmem:[%s0 + $0x190] sm:$0xff]
  %v133 = vld [vmem:[%s0 + $0x198] sm:$0xff]
  %v134 = vld [vmem:[%s0 + $0x1a0] sm:$0xff]
  %v135 = vld [vmem:[%s0 + $0x1a8] sm:$0xff]
  %v136 = vld [vmem:[%s0 + $0x1b0] sm:$0xff]
  %v137 = vld [vmem:[%s0 + $0x1b8] sm:$0xff]
  %v138 = vld [vmem:[%s0 + $0x1c0] sm:$0xff]
  %v139 = vld [vmem:[%s0 + $0x1c8] sm:$0xff]
  %v140 = vld [vmem:[%s0 + $0x1d0] sm:$0xff]
  %v141 = vld [vmem:[%s0 + $0x1d8] sm:$0xff]
  %v142 = vld [vmem:[%s0 + $0x1e0] sm:$0xff]
  %v143 = vld [vmem:[%s0 + $0x1e8] sm:$0xff]
  %v144 = vld [vmem:[%s0 + $0x1f0] sm:$0xff]
  %v145 = vld [vmem:[%s0 + $0x1f8] sm:$0xff]
  %v146 = vld [vmem:[%s1] sm:$0xff]
  %v147 = vld [vmem:[%s1 + $0x8] sm:$0xff]
  %v148 = vld [vmem:[%s1 + $0x10] sm:$0xff]
  %v149 = vld [vmem:[%s1 + $0x18] sm:$0xff]
  %v150 = vld [vmem:[%s1 + $0x20] sm:$0xff]
  %v151 = vld [vmem:[%s1 + $0x28] sm:$0xff]
  %v152 = vld [vmem:[%s1 + $0x30] sm:$0xff]
  %v153 = vld [vmem:[%s1 + $0x38] sm:$0xff]
  %v154 = vld [vmem:[%s1 + $0x40] sm:$0xff]
  %v155 = vld [vmem:[%s1 + $0x48] sm:$0xff]
  %v156 = vld [vmem:[%s1 + $0x50] sm:$0xff]
  %v157 = vld [vmem:[%s1 + $0x58] sm:$0xff]
  %v158 = vld [vmem:[%s1 + $0x60] sm:$0xff]
  %v159 = vld [vmem:[%s1 + $0x68] sm:$0xff]
  %v160 = vld [vmem:[%s1 + $0x70] sm:$0xff]
  %v161 = vld [vmem:[%s1 + $0x78] sm:$0xff]
  %v162 = vld [vmem:[%s1 + $0x80] sm:$0xff]
  %v163 = vld [vmem:[%s1 + $0x88] sm:$0xff]
  %v164 = vld [vmem:[%s1 + $0x90] sm:$0xff]
  %v165 = vld [vmem:[%s1 + $0x98] sm:$0xff]
  %v166 = vld [vmem:[%s1 + $0xa0] sm:$0xff]
  %v167 = vld [vmem:[%s1 + $0xa8] sm:$0xff]
  %v168 = vld [vmem:[%s1 + $0xb0] sm:$0xff]
  %v169 = vld [vmem:[%s1 + $0xb8] sm:$0xff]
  %v170 = vld [vmem:[%s1 + $0xc0] sm:$0xff]
  %v171 = vld [vmem:[%s1 + $0xc8] sm:$0xff]
  %v172 = vld [vmem:[%s1 + $0xd0] sm:$0xff]
  %v173 = vld [vmem:[%s1 + $0xd8] sm:$0xff]
  %v174 = vld [vmem:[%s1 + $0xe0] sm:$0xff]
  %v175 = vld [vmem:[%s1 + $0xe8] sm:$0xff]
  %v176 = vld [vmem:[%s1 + $0xf0] sm:$0xff]
  %v177 = vld [vmem:[%s1 + $0xf8] sm:$0xff]
  %178 = vmatprep.subr.mxu0 0.0
  %179 = vmatpush1.msra.mxu0 %v146
  %180 = vmatprep.subr.mxu0 0.0
  %181 = vmatpush1.msra.mxu0 %v147
  %182 = vmatprep.subr.mxu0 0.0
  %183 = vmatpush1.msra.mxu0 %v148
  %184 = vmatprep.subr.mxu0 0.0
  %185 = vmatpush1.msra.mxu0 %v149
  %186 = vmatprep.subr.mxu0 0.0
  %187 = vmatpush1.msra.mxu0 %v150
  %188 = vmatprep.subr.mxu0 0.0
  %189 = vmatpush1.msra.mxu0 %v151
  %190 = vmatprep.subr.mxu0 0.0
  %191 = vmatpush1.msra.mxu0 %v152
  %192 = vmatprep.subr.mxu0 0.0
  %193 = vmatpush1.msra.mxu0 %v153
  %194 = vmatprep.subr.mxu0 0.0
  %195 = vmatpush1.msra.mxu0 %v154
  %196 = vmatprep.subr.mxu0 0.0
  %197 = vmatpush1.msra.mxu0 %v155
  %198 = vmatprep.subr.mxu0 0.0
  %199 = vmatpush1.msra.mxu0 %v156
  %200 = vmatprep.subr.mxu0 0.0
  %201 = vmatpush1.msra.mxu0 %v157
  %202 = vmatprep.subr.mxu0 0.0
  %203 = vmatpush1.msra.mxu0 %v158
  %204 = vmatprep.subr.mxu0 0.0
  %205 = vmatpush1.msra.mxu0 %v159
  %206 = vmatprep.subr.mxu0 0.0
  %207 = vmatpush1.msra.mxu0 %v160
  %208 = vmatprep.subr.mxu0 0.0
  %209 = vmatpush1.msra.mxu0 %v161
  %210 = vmatprep.subr.mxu0 0.0
  %211 = vmatpush1.msra.mxu0 %v162
  %212 = vmatprep.subr.mxu0 0.0
  %213 = vmatpush1.msra.mxu0 %v163
  %214 = vmatprep.subr.mxu0 0.0
  %215 = vmatpush1.msra.mxu0 %v164
  %216 = vmatprep.subr.mxu0 0.0
  %217 = vmatpush1.msra.mxu0 %v165
  %218 = vmatprep.subr.mxu0 0.0
  %219 = vmatpush1.msra.mxu0 %v166
  %220 = vmatprep.subr.mxu0 0.0
  %221 = vmatpush1.msra.mxu0 %v167
  %222 = vmatprep.subr.mxu0 0.0
  %223 = vmatpush1.msra.mxu0 %v168
  %224 = vmatprep.subr.mxu0 0.0
  %225 = vmatpush1.msra.mxu0 %v169
  %226 = vmatprep.subr.mxu0 0.0
  %227 = vmatpush1.msra.mxu0 %v170
  %228 = vmatprep.subr.mxu0 0.0
  %229 = vmatpush1.msra.mxu0 %v171
  %230 = vmatprep.subr.mxu0 0.0
  %231 = vmatpush1.msra.mxu0 %v172
  %232 = vmatprep.subr.mxu0 0.0
  %233 = vmatpush1.msra.mxu0 %v173
  %234 = vmatprep.subr.mxu0 0.0
  %235 = vmatpush1.msra.mxu0 %v174
  %236 = vmatprep.subr.mxu0 0.0
  %237 = vmatpush1.msra.mxu0 %v175
  %238 = vmatprep.subr.mxu0 0.0
  %239 = vmatpush1.msra.mxu0 %v176
  %240 = vmatprep.subr.mxu0 0.0
  %241 = vmatpush1.msra.mxu0 %v177
  %242 = vmatprep.mubr.f32.mxu0 %v83
  %243 = vmatmul.mubr.f32.gmra.mrb[0].mxu0 %v82
  %v244 = vpop.f32.mrb[0].mxu0
  %v245 = vadd.f32 0.0, %v244
  %v246 = vpop.f32.mrb[0].mxu0
  %247 = vmatprep.mubr.f32.mxu0 %v85
  %248 = vmatmul.mubr.f32.gmra.mrb[0].mxu0 %v84
  %v249 = vpop.f32.mrb[0].mxu0
  %v250 = vadd.f32 0.0, %v249
  %v251 = vpop.f32.mrb[0].mxu0
  %252 = vmatprep.mubr.f32.mxu0 %v87
  %253 = vmatmul.mubr.f32.gmra.mrb[0].mxu0 %v86
  %v254 = vpop.f32.mrb[0].mxu0
  %v255 = vadd.f32 0.0, %v254
  %v256 = vpop.f32.mrb[0].mxu0
  %257 = vmatprep.mubr.f32.mxu0 %v89
  %258 = vmatmul.mubr.f32.gmra.mrb[0].mxu0 %v88
  %v259 = vpop.f32.mrb[0].mxu0
  %v260 = vadd.f32 0.0, %v259
  %v261 = vpop.f32.mrb[0].mxu0
  %262 = vmatprep.mubr.f32.mxu0 %v91
  %263 = vmatmul.mubr.f32.gmra.mrb[0].mxu0 %v90
  %v264 = vpop.f32.mrb[0].mxu0
  %v265 = vadd.f32 0.0, %v264
  %v266 = vpop.f32.mrb[0].mxu0
  %267 = vmatprep.mubr.f32.mxu0 %v93
  %268 = vmatmul.mubr.f32.gmra.mrb[0].mxu0 %v92
  %v269 = vpop.f32.mrb[0].mxu0
  %v270 = vadd.f32 0.0, %v269
  %v271 = vpop.f32.mrb[0].mxu0
  %272 = vmatprep.mubr.f32.mxu0 %v95
  %273 = vmatmul.mubr.f32.gmra.mrb[0].mxu0 %v94
  %v274 = vpop.f32.mrb[0].mxu0
  %v275 = vadd.f32 0.0, %v274
  %v276 = vpop.f32.mrb[0].mxu0
  %277 = vmatprep.mubr.f32.mxu0 %v97
  %278 = vmatmul.mubr.f32.gmra.mrb[0].mxu0 %v96
  %v279 = vpop.f32.mrb[0].mxu0
  %v280 = vadd.f32 0.0, %v279
  %v281 = vpop.f32.mrb[0].mxu0
  %282 = vmatprep.mubr.f32.mxu0 %v99
  %283 = vmatmul.mubr.f32.gmra.mrb[0].mxu0 %v98
  %v284 = vpop.f32.mrb[0].mxu0
  %v285 = vadd.f32 0.0, %v284
  %v286 = vpop.f32.mrb[0].mxu0
  %287 = vmatprep.mubr.f32.mxu0 %v101
  %288 = vmatmul.mubr.f32.gmra.mrb[0].mxu0 %v100
  %v289 = vpop.f32.mrb[0].mxu0
  %v290 = vadd.f32 0.0, %v289
  %v291 = vpop.f32.mrb[0].mxu0
  %292 = vmatprep.mubr.f32.mxu0 %v103
  %293 = vmatmul.mubr.f32.gmra.mrb[0].mxu0 %v102
  %v294 = vpop.f32.mrb[0].mxu0
  %v295 = vadd.f32 0.0, %v294
  %v296 = vpop.f32.mrb[0].mxu0
  %297 = vmatprep.mubr.f32.mxu0 %v105
  %298 = vmatmul.mubr.f32.gmra.mrb[0].mxu0 %v104
  %v299 = vpop.f32.mrb[0].mxu0
  %v300 = vadd.f32 0.0, %v299
  %v301 = vpop.f32.mrb[0].mxu0
  %302 = vmatprep.mubr.f32.mxu0 %v107
  %303 = vmatmul.mubr.f32.gmra.mrb[0].mxu0 %v106
  %v304 = vpop.f32.mrb[0].mxu0
  %v305 = vadd.f32 0.0, %v304
  %v306 = vpop.f32.mrb[0].mxu0
  %307 = vmatprep.mubr.f32.mxu0 %v109
  %308 = vmatmul.mubr.f32.gmra.mrb[0].mxu0 %v108
  %v309 = vpop.f32.mrb[0].mxu0
  %v310 = vadd.f32 0.0, %v309
  %v311 = vpop.f32.mrb[0].mxu0
  %312 = vmatprep.mubr.f32.mxu0 %v111
  %313 = vmatmul.mubr.f32.gmra.mrb[0].mxu0 %v110
  %v314 = vpop.f32.mrb[0].mxu0
  %v315 = vadd.f32 0.0, %v314
  %v316 = vpop.f32.mrb[0].mxu0
  %317 = vmatprep.mubr.f32.mxu0 %v113
  %318 = vmatmul.mubr.f32.gmra.mrb[0].mxu0 %v112
  %v319 = vpop.f32.mrb[0].mxu0
  %v320 = vadd.f32 0.0, %v319
  %v321 = vpop.f32.mrb[0].mxu0
  %322 = vmatprep.mubr.f32.mxu0 %v115
  %323 = vmatmul.mubr.f32.gmra.mrb[0].mxu0 %v114
  %v324 = vpop.f32.mrb[0].mxu0
  %v325 = vadd.f32 0.0, %v324
  %v326 = vpop.f32.mrb[0].mxu0
  %327 = vmatprep.mubr.f32.mxu0 %v117
  %328 = vmatmul.mubr.f32.gmra.mrb[0].mxu0 %v116
  %v329 = vpop.f32.mrb[0].mxu0
  %v330 = vadd.f32 0.0, %v329
  %v331 = vpop.f32.mrb[0].mxu0
  %332 = vmatprep.mubr.f32.mxu0 %v119
  %333 = vmatmul.mubr.f32.gmra.mrb[0].mxu0 %v118
  %v334 = vpop.f32.mrb[0].mxu0
  %v335 = vadd.f32 0.0, %v334
  %v336 = vpop.f32.mrb[0].mxu0
  %337 = vmatprep.mubr.f32.mxu0 %v121
  %338 = vmatmul.mubr.f32.gmra.mrb[0].mxu0 %v120
  %v339 = vpop.f32.mrb[0].mxu0
  %v340 = vadd.f32 0.0, %v339
  %v341 = vpop.f32.mrb[0].mxu0
  %342 = vmatprep.mubr.f32.mxu0 %v123
  %343 = vmatmul.mubr.f32.gmra.mrb[0].mxu0 %v122
  %v344 = vpop.f32.mrb[0].mxu0
  %v345 = vadd.f32 0.0, %v344
  %v346 = vpop.f32.mrb[0].mxu0
  %347 = vmatprep.mubr.f32.mxu0 %v125
  %348 = vmatmul.mubr.f32.gmra.mrb[0].mxu0 %v124
  %v349 = vpop.f32.mrb[0].mxu0
  %v350 = vadd.f32 0.0, %v349
  %v351 = vpop.f32.mrb[0].mxu0
  %352 = vmatprep.mubr.f32.mxu0 %v127
  %353 = vmatmul.mubr.f32.gmra.mrb[0].mxu0 %v126
  %v354 = vpop.f32.mrb[0].mxu0
  %v355 = vadd.f32 0.0, %v354
  %v356 = vpop.f32.mrb[0].mxu0
  %357 = vmatprep.mubr.f32.mxu0 %v129
  %358 = vmatmul.mubr.f32.gmra.mrb[0].mxu0 %v128
  %v359 = vpop.f32.mrb[0].mxu0
  %v360 = vadd.f32 0.0, %v359
  %v361 = vpop.f32.mrb[0].mxu0
  %362 = vmatprep.mubr.f32.mxu0 %v131
  %363 = vmatmul.mubr.f32.gmra.mrb[0].mxu0 %v130
  %v364 = vpop.f32.mrb[0].mxu0
  %v365 = vadd.f32 0.0, %v364
  %v366 = vpop.f32.mrb[0].mxu0
  %367 = vmatprep.mubr.f32.mxu0 %v133
  %368 = vmatmul.mubr.f32.gmra.mrb[0].mxu0 %v132
  %v369 = vpop.f32.mrb[0].mxu0
  %v370 = vadd.f32 0.0, %v369
  %v371 = vpop.f32.mrb[0].mxu0
  %372 = vmatprep.mubr.f32.mxu0 %v135
  %373 = vmatmul.mubr.f32.gmra.mrb[0].mxu0 %v134
  %v374 = vpop.f32.mrb[0].mxu0
  %v375 = vadd.f32 0.0, %v374
  %v376 = vpop.f32.mrb[0].mxu0
  %377 = vmatprep.mubr.f32.mxu0 %v137
  %378 = vmatmul.mubr.f32.gmra.mrb[0].mxu0 %v136
  %v379 = vpop.f32.mrb[0].mxu0
  %v380 = vadd.f32 0.0, %v379
  %v381 = vpop.f32.mrb[0].mxu0
  %382 = vmatprep.mubr.f32.mxu0 %v139
  %383 = vmatmul.mubr.f32.gmra.mrb[0].mxu0 %v138
  %v384 = vpop.f32.mrb[0].mxu0
  %v385 = vadd.f32 0.0, %v384
  %v386 = vpop.f32.mrb[0].mxu0
  %387 = vmatprep.mubr.f32.mxu0 %v141
  %388 = vmatmul.mubr.f32.gmra.mrb[0].mxu0 %v140
  %v389 = vpop.f32.mrb[0].mxu0
  %v390 = vadd.f32 0.0, %v389
  %v391 = vpop.f32.mrb[0].mxu0
  %392 = vmatprep.mubr.f32.mxu0 %v143
  %393 = vmatmul.mubr.f32.gmra.mrb[0].mxu0 %v142
  %v394 = vpop.f32.mrb[0].mxu0
  %v395 = vadd.f32 0.0, %v394
  %v396 = vpop.f32.mrb[0].mxu0
  %397 = vmatprep.mubr.f32.mxu0 %v145
  %398 = vmatmul.mubr.f32.gmra.mrb[0].mxu0 %v144
  %v399 = vpop.f32.mrb[0].mxu0
  %v400 = vadd.f32 0.0, %v399
  %v401 = vpop.f32.mrb[0].mxu0
  %402 = vdwg.mxu0
  %v403 = vadd.f32 %v50, %v245
  %v404 = vadd.f32 %v51, %v250
  %v405 = vadd.f32 %v52, %v255
  %v406 = vadd.f32 %v53, %v260
  %v407 = vadd.f32 %v54, %v265
  %v408 = vadd.f32 %v55, %v270
  %v409 = vadd.f32 %v56, %v275
  %v410 = vadd.f32 %v57, %v280
  %v411 = vadd.f32 %v58, %v285
  %v412 = vadd.f32 %v59, %v290
  %v413 = vadd.f32 %v60, %v295
  %v414 = vadd.f32 %v61, %v300
  %v415 = vadd.f32 %v62, %v305
  %v416 = vadd.f32 %v63, %v310
  %v417 = vadd.f32 %v64, %v315
  %v418 = vadd.f32 %v65, %v320
  %v419 = vadd.f32 %v66, %v325
  %v420 = vadd.f32 %v67, %v330
  %v421 = vadd.f32 %v68, %v335
  %v422 = vadd.f32 %v69, %v340
  %v423 = vadd.f32 %v70, %v345
  %v424 = vadd.f32 %v71, %v350
  %v425 = vadd.f32 %v72, %v355
  %v426 = vadd.f32 %v73, %v360
  %v427 = vadd.f32 %v74, %v365
  %v428 = vadd.f32 %v75, %v370
  %v429 = vadd.f32 %v76, %v375
  %v430 = vadd.f32 %v77, %v380
  %v431 = vadd.f32 %v78, %v385
  %v432 = vadd.f32 %v79, %v390
  %v433 = vadd.f32 %v80, %v395
  %v434 = vadd.f32 %v81, %v400
  %435 = vst [vmem:[#allocation2] sm:$0xff] %v403
  %436 = vst [vmem:[#allocation2 + $0x8] sm:$0xff] %v404
  %437 = vst [vmem:[#allocation2 + $0x10] sm:$0xff] %v405
  %438 = vst [vmem:[#allocation2 + $0x18] sm:$0xff] %v406
  %439 = vst [vmem:[#allocation2 + $0x20] sm:$0xff] %v407
  %440 = vst [vmem:[#allocation2 + $0x28] sm:$0xff] %v408
  %441 = vst [vmem:[#allocation2 + $0x30] sm:$0xff] %v409
  %442 = vst [vmem:[#allocation2 + $0x38] sm:$0xff] %v410
  %443 = vst [vmem:[#allocation2 + $0x40] sm:$0xff] %v411
  %444 = vst [vmem:[#allocation2 + $0x48] sm:$0xff] %v412
  %445 = vst [vmem:[#allocation2 + $0x50] sm:$0xff] %v413
  %446 = vst [vmem:[#allocation2 + $0x58] sm:$0xff] %v414
  %447 = vst [vmem:[#allocation2 + $0x60] sm:$0xff] %v415
  %448 = vst [vmem:[#allocation2 + $0x68] sm:$0xff] %v416
  %449 = vst [vmem:[#allocation2 + $0x70] sm:$0xff] %v417
  %450 = vst [vmem:[#allocation2 + $0x78] sm:$0xff] %v418
  %451 = vst [vmem:[#allocation2 + $0x80] sm:$0xff] %v419
  %452 = vst [vmem:[#allocation2 + $0x88] sm:$0xff] %v420
  %453 = vst [vmem:[#allocation2 + $0x90] sm:$0xff] %v421
  %454 = vst [vmem:[#allocation2 + $0x98] sm:$0xff] %v422
  %455 = vst [vmem:[#allocation2 + $0xa0] sm:$0xff] %v423
  %456 = vst [vmem:[#allocation2 + $0xa8] sm:$0xff] %v424
  %457 = vst [vmem:[#allocation2 + $0xb0] sm:$0xff] %v425
  %458 = vst [vmem:[#allocation2 + $0xb8] sm:$0xff] %v426
  %459 = vst [vmem:[#allocation2 + $0xc0] sm:$0xff] %v427
  %460 = vst [vmem:[#allocation2 + $0xc8] sm:$0xff] %v428
  %461 = vst [vmem:[#allocation2 + $0xd0] sm:$0xff] %v429
  %462 = vst [vmem:[#allocation2 + $0xd8] sm:$0xff] %v430
  %463 = vst [vmem:[#allocation2 + $0xe0] sm:$0xff] %v431
  %464 = vst [vmem:[#allocation2 + $0xe8] sm:$0xff] %v432
  %465 = vst [vmem:[#allocation2 + $0xf0] sm:$0xff] %v433
  %466 = vst [vmem:[#allocation2 + $0xf8] sm:$0xff] %v434
  // Predicated region
  $region18: #{gcn_forward.5} parent=0 // pred_check
    %p467 = pneg %p14
  $region19: #{gcn_forward.5} parent=0 // pred_check_branch
    %469 = sbr.rel (%p467) target = $region21
  $region20: #{gcn_forward.5} parent=0 // pred_region
    %v470 = vld [vmem:[#allocation2] sm:$0xff]
    %v471 = vld [vmem:[#allocation2 + $0x8] sm:$0xff]
    %v472 = vld [vmem:[#allocation2 + $0x10] sm:$0xff]
    %v473 = vld [vmem:[#allocation2 + $0x18] sm:$0xff]
    %v474 = vld [vmem:[#allocation2 + $0x20] sm:$0xff]
    %v475 = vld [vmem:[#allocation2 + $0x28] sm:$0xff]
    %v476 = vld [vmem:[#allocation2 + $0x30] sm:$0xff]
    %v477 = vld [vmem:[#allocation2 + $0x38] sm:$0xff]
    %v478 = vld [vmem:[#allocation2 + $0x40] sm:$0xff]
    %v479 = vld [vmem:[#allocation2 + $0x48] sm:$0xff]
    %v480 = vld [vmem:[#allocation2 + $0x50] sm:$0xff]
    %v481 = vld [vmem:[#allocation2 + $0x58] sm:$0xff]
    %v482 = vld [vmem:[#allocation2 + $0x60] sm:$0xff]
    %v483 = vld [vmem:[#allocation2 + $0x68] sm:$0xff]
    %v484 = vld [vmem:[#allocation2 + $0x70] sm:$0xff]
    %v485 = vld [vmem:[#allocation2 + $0x78] sm:$0xff]
    %v486 = vld [vmem:[#allocation2 + $0x80] sm:$0xff]
    %v487 = vld [vmem:[#allocation2 + $0x88] sm:$0xff]
    %v488 = vld [vmem:[#allocation2 + $0x90] sm:$0xff]
    %v489 = vld [vmem:[#allocation2 + $0x98] sm:$0xff]
    %v490 = vld [vmem:[#allocation2 + $0xa0] sm:$0xff]
    %v491 = vld [vmem:[#allocation2 + $0xa8] sm:$0xff]
    %v492 = vld [vmem:[#allocation2 + $0xb0] sm:$0xff]
    %v493 = vld [vmem:[#allocation2 + $0xb8] sm:$0xff]
    %v494 = vld [vmem:[#allocation2 + $0xc0] sm:$0xff]
    %v495 = vld [vmem:[#allocation2 + $0xc8] sm:$0xff]
    %v496 = vld [vmem:[#allocation2 + $0xd0] sm:$0xff]
    %v497 = vld [vmem:[#allocation2 + $0xd8] sm:$0xff]
    %v498 = vld [vmem:[#allocation2 + $0xe0] sm:$0xff]
    %v499 = vld [vmem:[#allocation2 + $0xe8] sm:$0xff]
    %v500 = vld [vmem:[#allocation2 + $0xf0] sm:$0xff]
    %v501 = vld [vmem:[#allocation2 + $0xf8] sm:$0xff]
    %v502 = vld [vmem:[%s2] sm:$0x1]
    %v504 = vlaneseq
    %v505 = vshrl.u32 %v504, 7
    %v506 = vsub.s32 0, %v505
    %v507 = vrot.slane %v502, %v506
    %v509 = vadd.f32 %v470, %v507
    %v510 = vadd.f32 %v471, %v507
    %v511 = vadd.f32 %v472, %v507
    %v512 = vadd.f32 %v473, %v507
    %v513 = vadd.f32 %v474, %v507
    %v514 = vadd.f32 %v475, %v507
    %v515 = vadd.f32 %v476, %v507
    %v516 = vadd.f32 %v477, %v507
    %v517 = vadd.f32 %v478, %v507
    %v518 = vadd.f32 %v479, %v507
    %v519 = vadd.f32 %v480, %v507
    %v520 = vadd.f32 %v481, %v507
    %v521 = vadd.f32 %v482, %v507
    %v522 = vadd.f32 %v483, %v507
    %v523 = vadd.f32 %v484, %v507
    %v524 = vadd.f32 %v485, %v507
    %v525 = vadd.f32 %v486, %v507
    %v526 = vadd.f32 %v487, %v507
    %v527 = vadd.f32 %v488, %v507
    %v528 = vadd.f32 %v489, %v507
    %v529 = vadd.f32 %v490, %v507
    %v530 = vadd.f32 %v491, %v507
    %v531 = vadd.f32 %v492, %v507
    %v532 = vadd.f32 %v493, %v507
    %v533 = vadd.f32 %v494, %v507
    %v534 = vadd.f32 %v495, %v507
    %v535 = vadd.f32 %v496, %v507
    %v536 = vadd.f32 %v497, %v507
    %v537 = vadd.f32 %v498, %v507
    %v538 = vadd.f32 %v499, %v507
    %v539 = vadd.f32 %v500, %v507
    %v540 = vadd.f32 %v501, %v507
    %v541 = vmax.f32 %v509, 0.0
    %v542 = vmax.f32 %v510, 0.0
    %v543 = vmax.f32 %v511, 0.0
    %v544 = vmax.f32 %v512, 0.0
    %v545 = vmax.f32 %v513, 0.0
    %v546 = vmax.f32 %v514, 0.0
    %v547 = vmax.f32 %v515, 0.0
    %v548 = vmax.f32 %v516, 0.0
    %v549 = vmax.f32 %v517, 0.0
    %v550 = vmax.f32 %v518, 0.0
    %v551 = vmax.f32 %v519, 0.0
    %v552 = vmax.f32 %v520, 0.0
    %v553 = vmax.f32 %v521, 0.0
    %v554 = vmax.f32 %v522, 0.0
    %v555 = vmax.f32 %v523, 0.0
    %v556 = vmax.f32 %v524, 0.0
    %v557 = vmax.f32 %v525, 0.0
    %v558 = vmax.f32 %v526, 0.0
    %v559 = vmax.f32 %v527, 0.0
    %v560 = vmax.f32 %v528, 0.0
    %v561 = vmax.f32 %v529, 0.0
    %v562 = vmax.f32 %v530, 0.0
    %v563 = vmax.f32 %v531, 0.0
    %v564 = vmax.f32 %v532, 0.0
    %v565 = vmax.f32 %v533, 0.0
    %v566 = vmax.f32 %v534, 0.0
    %v567 = vmax.f32 %v535, 0.0
    %v568 = vmax.f32 %v536, 0.0
    %v569 = vmax.f32 %v537, 0.0
    %v570 = vmax.f32 %v538, 0.0
    %v571 = vmax.f32 %v539, 0.0
    %v572 = vmax.f32 %v540, 0.0
    %573 = vst [vmem:[%s3] sm:$0xff] %v541
    %574 = vst [vmem:[%s3 + $0x8] sm:$0xff] %v542
    %575 = vst [vmem:[%s3 + $0x10] sm:$0xff] %v543
    %576 = vst [vmem:[%s3 + $0x18] sm:$0xff] %v544
    %577 = vst [vmem:[%s3 + $0x20] sm:$0xff] %v545
    %578 = vst [vmem:[%s3 + $0x28] sm:$0xff] %v546
    %579 = vst [vmem:[%s3 + $0x30] sm:$0xff] %v547
    %580 = vst [vmem:[%s3 + $0x38] sm:$0xff] %v548
    %581 = vst [vmem:[%s3 + $0x40] sm:$0xff] %v549
    %582 = vst [vmem:[%s3 + $0x48] sm:$0xff] %v550
    %583 = vst [vmem:[%s3 + $0x50] sm:$0xff] %v551
    %584 = vst [vmem:[%s3 + $0x58] sm:$0xff] %v552
    %585 = vst [vmem:[%s3 + $0x60] sm:$0xff] %v553
    %586 = vst [vmem:[%s3 + $0x68] sm:$0xff] %v554
    %587 = vst [vmem:[%s3 + $0x70] sm:$0xff] %v555
    %588 = vst [vmem:[%s3 + $0x78] sm:$0xff] %v556
    %589 = vst [vmem:[%s3 + $0x80] sm:$0xff] %v557
    %590 = vst [vmem:[%s3 + $0x88] sm:$0xff] %v558
    %591 = vst [vmem:[%s3 + $0x90] sm:$0xff] %v559
    %592 = vst [vmem:[%s3 + $0x98] sm:$0xff] %v560
    %593 = vst [vmem:[%s3 + $0xa0] sm:$0xff] %v561
    %594 = vst [vmem:[%s3 + $0xa8] sm:$0xff] %v562
    %595 = vst [vmem:[%s3 + $0xb0] sm:$0xff] %v563
    %596 = vst [vmem:[%s3 + $0xb8] sm:$0xff] %v564
    %597 = vst [vmem:[%s3 + $0xc0] sm:$0xff] %v565
    %598 = vst [vmem:[%s3 + $0xc8] sm:$0xff] %v566
    %599 = vst [vmem:[%s3 + $0xd0] sm:$0xff] %v567
    %600 = vst [vmem:[%s3 + $0xd8] sm:$0xff] %v568
    %601 = vst [vmem:[%s3 + $0xe0] sm:$0xff] %v569
    %602 = vst [vmem:[%s3 + $0xe8] sm:$0xff] %v570
    %603 = vst [vmem:[%s3 + $0xf0] sm:$0xff] %v571
    %604 = vst [vmem:[%s3 + $0xf8] sm:$0xff] %v572
  $region21: #{gcn_forward.5} parent=0 // pred_fallthru
    _
  // Predicated region
  $region22: #{gcn_forward.5} parent=0 // pred_check
    _
  $region23: #{gcn_forward.5} parent=0 // pred_check_branch
    %606 = sbr.rel (0) target = $region25
  $region24: #{gcn_forward.5} parent=0 // pred_region
    _
  $region25: #{gcn_forward.5} parent=0 // pred_fallthru
    _
  // Predicated region
  $region26: #{gcn_forward.5} parent=0 // pred_check
    _
  $region27: #{gcn_forward.5} parent=0 // pred_check_branch
    %608 = sbr.rel (0) target = $region29
  $region28: #{gcn_forward.5} parent=0 // pred_region
    _
  $region29: #{gcn_forward.5} parent=0 // pred_fallthru
    _

</llo_original>
